<compile_context>
chip_gen: v7x
topology: tpu7x:2x2x1
jax: 0.10.0
libtpu: 0.0.40
codegen_flags: <defaults>
</compile_context>

<pallas_src>
import jax
import jax.numpy as jnp
from jax.experimental import pallas as pl
from jax.experimental.pallas import tpu as pltpu


_BN_EPS = 1e-5
_COUT_PAD = 128            # lane-dense output / MXU N dimension (do NOT raise to 256: mem-bound)
_TM = 512                  # rows per grid step; ~85% of HBM roofline, fits v7x's 64 MiB VMEM
_VMEM_LIMIT = 32 * 1024 * 1024
_RECOMPUTE_K_MAX = 256     # recompute GEMM in pass 2 iff 2*K bytes/row < bf16-y round trip


# ----------------------------- Pass 1 kernels -----------------------------

def _conv_stats_kernel(p_ref, w_ref, sum_ref, ssq_ref):
    """Conv GEMM tile + per-channel sum / sum(x^2) accumulation (recompute path).

    p_ref:   (TM, K)       bf16 im2col patches tile
    w_ref:   (K, 128)      bf16 conv weight (resident across the grid)
    sum_ref: (1, 1, 128)   f32 running per-channel sum   (resident across inner axis)
    ssq_ref: (1, 1, 128)   f32 running per-channel sum(x^2)
    """
    @pl.when(pl.program_id(1) == 0)
    def _init():
        sum_ref[...] = jnp.zeros_like(sum_ref)
        ssq_ref[...] = jnp.zeros_like(ssq_ref)

    y = jnp.dot(p_ref[...], w_ref[...], preferred_element_type=jnp.float32)
    sum_ref[...] += jnp.sum(y, axis=0, keepdims=True).reshape(sum_ref.shape)
    ssq_ref[...] += jnp.sum(y * y, axis=0, keepdims=True).reshape(ssq_ref.shape)


def _conv_stats_store_kernel(p_ref, w_ref, y_ref, sum_ref, ssq_ref):
    """Same as above, but also stores the conv output y as bf16 (store path, large K)."""
    @pl.when(pl.program_id(1) == 0)
    def _init():
        sum_ref[...] = jnp.zeros_like(sum_ref)
        ssq_ref[...] = jnp.zeros_like(ssq_ref)

    y = jnp.dot(p_ref[...], w_ref[...], preferred_element_type=jnp.float32)
    y_ref[...] = y.astype(y_ref.dtype)
    sum_ref[...] += jnp.sum(y, axis=0, keepdims=True).reshape(sum_ref.shape)
    ssq_ref[...] += jnp.sum(y * y, axis=0, keepdims=True).reshape(ssq_ref.shape)


# ----------------------------- Pass 2 kernels -----------------------------

def _conv_bn_relu_kernel(p_ref, w_ref, scale_ref, shift_ref, o_ref):
    """Recompute conv GEMM tile, apply folded BN affine + ReLU, bf16 lane-dense stores."""
    y = jnp.dot(p_ref[...], w_ref[...], preferred_element_type=jnp.float32)
    o_ref[...] = jnp.maximum(y * scale_ref[...] + shift_ref[...], 0.0).astype(o_ref.dtype)


def _bn_relu_kernel(y_ref, scale_ref, shift_ref, o_ref):
    """Read stored bf16 conv output, apply folded BN affine + ReLU (store path)."""
    y = y_ref[...].astype(jnp.float32)
    o_ref[...] = jnp.maximum(y * scale_ref[...] + shift_ref[...], 0.0).astype(o_ref.dtype)


# ----------------------------- Wrapper -----------------------------

def _im2col_nhwc(x_nhwc, kh_sz, kw_sz, stride):
    """Plain-JAX glue: (N*Ho*Wo, KH*KW*Cin) patches, kh-major / kw / Cin column order."""
    n, h, w, cin = x_nhwc.shape
    ho = (h - kh_sz) // stride + 1
    wo = (w - kw_sz) // stride + 1
    cols = []
    for kh in range(kh_sz):
        for kw in range(kw_sz):
            cols.append(x_nhwc[:, kh:kh + (ho - 1) * stride + 1:stride,
                               kw:kw + (wo - 1) * stride + 1:stride, :])
    patches = jnp.concatenate(cols, axis=-1)                 # (N, Ho, Wo, KH*KW*Cin)
    return patches.reshape(n * ho * wo, kh_sz * kw_sz * cin), (n, ho, wo)


def residual_block_forward(x_nchw, conv_w_oihw, conv_b, bn_gamma, bn_beta,
                           *, stride=1, padding=0):
    """Forward matching the PyTorch ResidualBlock (train-mode BN). NCHW in / NCHW out (f32)."""
    assert stride >= 1
    del conv_b  # conv bias cancels exactly under train-mode BN mean subtraction
    n, cin, h, w = x_nchw.shape
    cout, cin_w, kh_sz, kw_sz = conv_w_oihw.shape
    assert cin == cin_w
    assert cout <= _COUT_PAD

    # bf16 *before* the layout ops: transpose/pad/im2col are pure HBM movement -> half bytes.
    x_bf16 = jnp.transpose(x_nchw.astype(jnp.bfloat16), (0, 2, 3, 1))   # NCHW -> NHWC
    if padding:
        x_bf16 = jnp.pad(x_bf16, ((0, 0), (padding, padding), (padding, padding), (0, 0)))

    patches, (n_, ho, wo) = _im2col_nhwc(x_bf16, kh_sz, kw_sz, stride)
    m, k = patches.shape

    # Tile M; split pass-1's reduction across NC=2 TensorCores when possible (v7x).
    num_m_tiles = pl.cdiv(m, _TM)
    nc = 2 if num_m_tiles >= 2 else 1
    inner = pl.cdiv(num_m_tiles, nc)
    total_tiles = nc * inner
    m_pad = total_tiles * _TM
    if m_pad != m:
        # Zero rows -> exactly zero conv output (no bias in-kernel) -> zero stats contribution.
        patches = jnp.pad(patches, ((0, m_pad - m), (0, 0)))

    # OIHW -> (KH, KW, Cin, Cout) -> (K, Cout), zero-padded to (K, 128), bf16.
    w_mat = jnp.transpose(conv_w_oihw, (2, 3, 1, 0)).reshape(k, cout)
    w_mat = jnp.pad(w_mat, ((0, 0), (0, _COUT_PAD - cout))).astype(jnp.bfloat16)
    g_pad = jnp.pad(bn_gamma.reshape(1, cout).astype(jnp.float32),
                    ((0, 0), (0, _COUT_PAD - cout)))
    b_pad = jnp.pad(bn_beta.reshape(1, cout).astype(jnp.float32),
                    ((0, 0), (0, _COUT_PAD - cout)))

    store_conv = k > _RECOMPUTE_K_MAX

    # ---------------- Pass 1: global per-channel sum / sum-of-squares ----------------
    patches_spec1 = pl.BlockSpec((_TM, k), lambda c, i: (c * inner + i, 0))
    weight_spec1 = pl.BlockSpec((k, _COUT_PAD), lambda c, i: (0, 0))
    acc_spec = pl.BlockSpec((1, 1, _COUT_PAD), lambda c, i: (c, 0, 0))
    acc_shape = jax.ShapeDtypeStruct((nc, 1, _COUT_PAD), jnp.float32)
    y_spec1 = pl.BlockSpec((_TM, _COUT_PAD), lambda c, i: (c * inner + i, 0))

    gemm_flops = 2 * m_pad * k * _COUT_PAD
    patch_bytes = m_pad * k * 2
    weight_bytes = k * _COUT_PAD * 2
    acc_bytes = 2 * nc * _COUT_PAD * 4
    y_bytes = m_pad * _COUT_PAD * 2

    stats_params = pltpu.CompilerParams(
        dimension_semantics=("parallel", "arbitrary"),   # outer -> TCs (v7x), inner -> reduce
        vmem_limit_bytes=_VMEM_LIMIT)

    if store_conv:
        y_conv, sums, ssq = pl.pallas_call(
            _conv_stats_store_kernel,
            grid=(nc, inner),
            in_specs=[patches_spec1, weight_spec1],
            out_specs=[y_spec1, acc_spec, acc_spec],
            out_shape=[jax.ShapeDtypeStruct((m_pad, _COUT_PAD), jnp.bfloat16),
                       acc_shape, acc_shape],
            compiler_params=stats_params,
            cost_estimate=pl.CostEstimate(
                flops=gemm_flops, transcendentals=0,
                bytes_accessed=patch_bytes + weight_bytes + acc_bytes + y_bytes),
        )(patches, w_mat)
    else:
        y_conv = None
        sums, ssq = pl.pallas_call(
            _conv_stats_kernel,
            grid=(nc, inner),
            in_specs=[patches_spec1, weight_spec1],
            out_specs=[acc_spec, acc_spec],
            out_shape=[acc_shape, acc_shape],
            compiler_params=stats_params,
            cost_estimate=pl.CostEstimate(
                flops=gemm_flops, transcendentals=0,
                bytes_accessed=patch_bytes + weight_bytes + acc_bytes),
        )(patches, w_mat)

    # Fold BN into one scale/shift pair per channel (tiny (1, 128) math in plain JAX).
    total_sum = jnp.sum(sums, axis=0)                    # (1, 128): add per-core partials
    total_ssq = jnp.sum(ssq, axis=0)
    inv_m = 1.0 / float(m)                               # real row count, not padded
    mean = total_sum * inv_m
    var = jnp.maximum(total_ssq * inv_m - mean * mean, 0.0)   # clamp tiny negative cancellation
    scale = g_pad * jax.lax.rsqrt(var + _BN_EPS)
    shift = b_pad - mean * scale

    # ---------------- Pass 2: normalize + affine + ReLU, bf16 lane-dense stores ----------------
    vec_spec = pl.BlockSpec((1, _COUT_PAD), lambda i: (0, 0))
    out_spec = pl.BlockSpec((_TM, _COUT_PAD), lambda i: (i, 0))
    out_shape = jax.ShapeDtypeStruct((m_pad, _COUT_PAD), jnp.bfloat16)
    pass2_params = pltpu.CompilerParams(
        dimension_semantics=("parallel",),               # tiles independent -> megacore
        vmem_limit_bytes=_VMEM_LIMIT)

    if store_conv:
        out_flat = pl.pallas_call(
            _bn_relu_kernel,
            grid=(total_tiles,),
            in_specs=[pl.BlockSpec((_TM, _COUT_PAD), lambda i: (i, 0)), vec_spec, vec_spec],
            out_specs=out_spec,
            out_shape=out_shape,
            compiler_params=pass2_params,
            cost_estimate=pl.CostEstimate(
                flops=3 * m_pad * _COUT_PAD, transcendentals=0,
                bytes_accessed=2 * y_bytes + 2 * _COUT_PAD * 4),
        )(y_conv, scale, shift)
    else:
        out_flat = pl.pallas_call(
            _conv_bn_relu_kernel,
            grid=(total_tiles,),
            in_specs=[pl.BlockSpec((_TM, k), lambda i: (i, 0)),
                      pl.BlockSpec((k, _COUT_PAD), lambda i: (0, 0)),
                      vec_spec, vec_spec],
            out_specs=out_spec,
            out_shape=out_shape,
            compiler_params=pass2_params,
            cost_estimate=pl.CostEstimate(
                flops=gemm_flops + 3 * m_pad * _COUT_PAD, transcendentals=0,
                bytes_accessed=patch_bytes + weight_bytes + 2 * _COUT_PAD * 4 + y_bytes),
        )(patches, w_mat, scale, shift)

    # (M_pad, 128) bf16 -> slice real rows / channels -> f32 -> NHWC -> NCHW.
    out_nhwc = out_flat[:m, :cout].astype(jnp.float32).reshape(n_, ho, wo, cout)
    return jnp.transpose(out_nhwc, (0, 3, 1, 2))


# ----------------------------- Reference & test -----------------------------

def _reference_forward(x_nchw, conv_w_oihw, conv_b, bn_gamma, bn_beta, *, stride=1, padding=0):
    """Pure-JAX reference (lax.conv, train-mode BN). bf16-quantized conv operands so the
    comparison is apples-to-apples with the MXU's bf16 x bf16 -> f32 path."""
    xq = x_nchw.astype(jnp.bfloat16).astype(jnp.float32)
    wq = conv_w_oihw.astype(jnp.bfloat16).astype(jnp.float32)
    z = jax.lax.conv_general_dilated(
        xq, wq, window_strides=(stride, stride),
        padding=[(padding, padding), (padding, padding)],
        dimension_numbers=("NCHW", "OIHW", "NCHW"))
    z = z + conv_b[None, :, None, None]
    mean = jnp.mean(z, axis=(0, 2, 3), keepdims=True)
    var = jnp.mean((z - mean) ** 2, axis=(0, 2, 3), keepdims=True)
    z = (z - mean) * jax.lax.rsqrt(var + _BN_EPS)
    z = z * bn_gamma[None, :, None, None] + bn_beta[None, :, None, None]
    return jnp.maximum(z, 0.0)


if __name__ == "__main__":
    def _init_params(key, cin, cout, ksz):
        # Deterministic init mirroring nn.Conv2d defaults (uniform +-1/sqrt(fan_in)) and
        # nn.BatchNorm2d defaults (gamma=1, beta=0).
        kw_, kb_ = jax.random.split(key)
        fan_in = cin * ksz * ksz
        bound = 1.0 / (fan_in ** 0.5)
        conv_w = jax.random.uniform(kw_, (cout, cin, ksz, ksz), jnp.float32, -bound, bound)
        conv_b = jax.random.uniform(kb_, (cout,), jnp.float32, -bound, bound)
        return conv_w, conv_b, jnp.ones((cout,), jnp.float32), jnp.zeros((cout,), jnp.float32)

    fwd = jax.jit(residual_block_forward, static_argnames=("stride", "padding"))
    key = jax.random.PRNGKey(0)

    # (name, N, Cin, H, W, Cout, K, stride, padding, tol)
    # "deep" exercises the K>256 store path (bf16 conv intermediate -> looser tolerance);
    # "strided" exercises stride/padding and the NC=2 pass-1 split (>= 2 row tiles).
    cases = [
        ("small",   2,  4, 16, 16, 8, 3, 1, 0, 5e-3),
        ("deep",    2, 32, 16, 16, 8, 3, 1, 0, 2e-2),
        ("strided", 2,  4, 40, 40, 8, 3, 2, 1, 5e-3),
    ]
    for name, n, cin, h, w, cout, ksz, stride, padding, tol in cases:
        key, kx, kp = jax.random.split(key, 3)
        x = jax.random.normal(kx, (n, cin, h, w), dtype=jnp.float32)
        conv_w, conv_b, gamma, beta = _init_params(kp, cin, cout, ksz)

        out = jax.block_until_ready(
            fwd(x, conv_w, conv_b, gamma, beta, stride=stride, padding=padding))
        ref = jax.block_until_ready(
            _reference_forward(x, conv_w, conv_b, gamma, beta, stride=stride, padding=padding))

        assert out.shape == ref.shape, (name, out.shape, ref.shape)
        max_err = float(jnp.max(jnp.abs(out - ref)))
        assert jnp.allclose(out, ref, rtol=tol, atol=tol), (name, max_err)

    print("KERNEL_OK")
</pallas_src>

<mosaic_0001>
module attributes {stable_mosaic.version = 11 : i64} {
  func.func @_conv_stats_kernel(%arg0: i32, %arg1: i32, %arg2: memref<512x36xbf16, #tpu.memory_space<vmem>>, %arg3: memref<36x128xbf16, #tpu.memory_space<vmem>>, %arg4: memref<1x1x128xf32, #tpu.memory_space<vmem>>, %arg5: memref<1x1x128xf32, #tpu.memory_space<vmem>>) attributes {dimension_semantics = [#tpu.dimension_semantics<parallel>, #tpu.dimension_semantics<arbitrary>], iteration_bounds = array<i64: 1, 1>, scalar_prefetch = 0 : i64, scratch_operands = 0 : i64, tpu.core_type = #tpu.core_type<tc>, window_params = [{transform_indices = @transform_0, window_bounds = array<i64: 512, 36>}, {pipeline_mode = #tpu.pipeline_mode<synchronous>, transform_indices = @transform_1, window_bounds = array<i64: 36, 128>}, {transform_indices = @transform_2, window_bounds = array<i64: 1, 1, 128>}, {transform_indices = @transform_3, window_bounds = array<i64: 1, 1, 128>}]} {
    %c0_i32 = arith.constant 0 : i32
    %0 = arith.cmpi eq, %arg1, %c0_i32 : i32
    %1 = arith.extui %0 : i1 to i32
    %c0_i32_0 = arith.constant 0 : i32
    %2 = arith.cmpi ne, %1, %c0_i32_0 : i32
    scf.if %2 {
      %cst_18 = arith.constant 0.000000e+00 : f32
      %19 = vector.broadcast %cst_18 : f32 to vector<1x1x128xf32>
      %c0_19 = arith.constant 0 : index
      %c0_20 = arith.constant 0 : index
      %c0_21 = arith.constant 0 : index
      %20 = vector.load %arg4[%c0_19, %c0_20, %c0_21] : memref<1x1x128xf32, #tpu.memory_space<vmem>>, vector<1x1x128xf32>
      tpu.vector_store %arg4[%c0_19, %c0_20, %c0_21], %19 {strides = array<i32>} : memref<1x1x128xf32, #tpu.memory_space<vmem>>, vector<1x1x128xf32>,
      %cst_22 = arith.constant 0.000000e+00 : f32
      %21 = vector.broadcast %cst_22 : f32 to vector<1x1x128xf32>
      %c0_23 = arith.constant 0 : index
      %c0_24 = arith.constant 0 : index
      %c0_25 = arith.constant 0 : index
      %22 = vector.load %arg5[%c0_23, %c0_24, %c0_25] : memref<1x1x128xf32, #tpu.memory_space<vmem>>, vector<1x1x128xf32>
      tpu.vector_store %arg5[%c0_23, %c0_24, %c0_25], %21 {strides = array<i32>} : memref<1x1x128xf32, #tpu.memory_space<vmem>>, vector<1x1x128xf32>,
    } else {
    }
    %c0 = arith.constant 0 : index
    %c0_1 = arith.constant 0 : index
    %3 = vector.load %arg2[%c0, %c0_1] : memref<512x36xbf16, #tpu.memory_space<vmem>>, vector<512x36xbf16>
    %c0_2 = arith.constant 0 : index
    %c0_3 = arith.constant 0 : index
    %4 = vector.load %arg3[%c0_2, %c0_3] : memref<36x128xbf16, #tpu.memory_space<vmem>>, vector<36x128xbf16>
    %cst = arith.constant dense<0.000000e+00> : vector<512x128xf32>
    %5 = tpu.matmul %3, %4, %cst {dimension_numbers = #tpu.dot_dimension_numbers<[1], [0], [0], [1], [0, 0, 1, 1], [], []>} : vector<512x36xbf16>, vector<36x128xbf16>, vector<512x128xf32> -> vector<512x128xf32>
    %c0_4 = arith.constant 0 : index
    %c0_5 = arith.constant 0 : index
    %c0_6 = arith.constant 0 : index
    %6 = vector.load %arg4[%c0_4, %c0_5, %c0_6] : memref<1x1x128xf32, #tpu.memory_space<vmem>>, vector<1x1x128xf32>
    %cst_7 = arith.constant dense<0.000000e+00> : vector<128xf32>
    %7 = vector.multi_reduction <add>, %5, %cst_7 [0] : vector<512x128xf32> to vector<128xf32>
    %8 = vector.shape_cast %7 : vector<128xf32> to vector<1x128xf32>
    %9 = vector.shape_cast %8 : vector<1x128xf32> to vector<1x1x128xf32>
    %10 = arith.addf %6, %9 : vector<1x1x128xf32>
    %c0_8 = arith.constant 0 : index
    %c0_9 = arith.constant 0 : index
    %c0_10 = arith.constant 0 : index
    %11 = vector.load %arg4[%c0_8, %c0_9, %c0_10] : memref<1x1x128xf32, #tpu.memory_space<vmem>>, vector<1x1x128xf32>
    tpu.vector_store %arg4[%c0_8, %c0_9, %c0_10], %10 {strides = array<i32>} : memref<1x1x128xf32, #tpu.memory_space<vmem>>, vector<1x1x128xf32>,
    %c0_11 = arith.constant 0 : index
    %c0_12 = arith.constant 0 : index
    %c0_13 = arith.constant 0 : index
    %12 = vector.load %arg5[%c0_11, %c0_12, %c0_13] : memref<1x1x128xf32, #tpu.memory_space<vmem>>, vector<1x1x128xf32>
    %13 = arith.mulf %5, %5 : vector<512x128xf32>
    %cst_14 = arith.constant dense<0.000000e+00> : vector<128xf32>
    %14 = vector.multi_reduction <add>, %13, %cst_14 [0] : vector<512x128xf32> to vector<128xf32>
    %15 = vector.shape_cast %14 : vector<128xf32> to vector<1x128xf32>
    %16 = vector.shape_cast %15 : vector<1x128xf32> to vector<1x1x128xf32>
    %17 = arith.addf %12, %16 : vector<1x1x128xf32>
    %c0_15 = arith.constant 0 : index
    %c0_16 = arith.constant 0 : index
    %c0_17 = arith.constant 0 : index
    %18 = vector.load %arg5[%c0_15, %c0_16, %c0_17] : memref<1x1x128xf32, #tpu.memory_space<vmem>>, vector<1x1x128xf32>
    tpu.vector_store %arg5[%c0_15, %c0_16, %c0_17], %17 {strides = array<i32>} : memref<1x1x128xf32, #tpu.memory_space<vmem>>, vector<1x1x128xf32>,
    return
  }
  func.func @transform_0(%arg0: i32, %arg1: i32) -> (i32, i32) {
    %c1_i32 = arith.constant 1 : i32
    %0 = arith.muli %arg0, %c1_i32 : i32
    %1 = arith.addi %0, %arg1 : i32
    %c0_i32 = arith.constant 0 : i32
    %c0_i32_0 = arith.constant 0 : i32
    return %1, %c0_i32 : i32, i32
  }
  func.func @transform_1(%arg0: i32, %arg1: i32) -> (i32, i32) {
    %c0_i32 = arith.constant 0 : i32
    %c0_i32_0 = arith.constant 0 : i32
    %c0_i32_1 = arith.constant 0 : i32
    return %c0_i32, %c0_i32_0 : i32, i32
  }
  func.func @transform_2(%arg0: i32, %arg1: i32) -> (i32, i32, i32) {
    %c0_i32 = arith.constant 0 : i32
    %c0_i32_0 = arith.constant 0 : i32
    %c0_i32_1 = arith.constant 0 : i32
    return %arg0, %c0_i32, %c0_i32_0 : i32, i32, i32
  }
  func.func @transform_3(%arg0: i32, %arg1: i32) -> (i32, i32, i32) {
    %c0_i32 = arith.constant 0 : i32
    %c0_i32_0 = arith.constant 0 : i32
    %c0_i32_1 = arith.constant 0 : i32
    return %arg0, %c0_i32, %c0_i32_0 : i32, i32, i32
  }
}

module attributes {stable_mosaic.version = 11 : i64} {
  func.func @_conv_bn_relu_kernel(%arg0: i32, %arg1: memref<512x36xbf16, #tpu.memory_space<vmem>>, %arg2: memref<36x128xbf16, #tpu.memory_space<vmem>>, %arg3: memref<1x128xf32, #tpu.memory_space<vmem>>, %arg4: memref<1x128xf32, #tpu.memory_space<vmem>>, %arg5: memref<512x128xbf16, #tpu.memory_space<vmem>>) attributes {dimension_semantics = [#tpu.dimension_semantics<parallel>], iteration_bounds = array<i64: 1>, scalar_prefetch = 0 : i64, scratch_operands = 0 : i64, tpu.core_type = #tpu.core_type<tc>, window_params = [{transform_indices = @transform_0, window_bounds = array<i64: 512, 36>}, {pipeline_mode = #tpu.pipeline_mode<synchronous>, transform_indices = @transform_1, window_bounds = array<i64: 36, 128>}, {pipeline_mode = #tpu.pipeline_mode<synchronous>, transform_indices = @transform_2, window_bounds = array<i64: 1, 128>}, {pipeline_mode = #tpu.pipeline_mode<synchronous>, transform_indices = @transform_3, window_bounds = array<i64: 1, 128>}, {transform_indices = @transform_4, window_bounds = array<i64: 512, 128>}]} {
    %c0 = arith.constant 0 : index
    %c0_0 = arith.constant 0 : index
    %0 = vector.load %arg1[%c0, %c0_0] : memref<512x36xbf16, #tpu.memory_space<vmem>>, vector<512x36xbf16>
    %c0_1 = arith.constant 0 : index
    %c0_2 = arith.constant 0 : index
    %1 = vector.load %arg2[%c0_1, %c0_2] : memref<36x128xbf16, #tpu.memory_space<vmem>>, vector<36x128xbf16>
    %cst = arith.constant dense<0.000000e+00> : vector<512x128xf32>
    %2 = tpu.matmul %0, %1, %cst {dimension_numbers = #tpu.dot_dimension_numbers<[1], [0], [0], [1], [0, 0, 1, 1], [], []>} : vector<512x36xbf16>, vector<36x128xbf16>, vector<512x128xf32> -> vector<512x128xf32>
    %c0_3 = arith.constant 0 : index
    %c0_4 = arith.constant 0 : index
    %3 = vector.load %arg3[%c0_3, %c0_4] : memref<1x128xf32, #tpu.memory_space<vmem>>, vector<1x128xf32>
    %4 = vector.broadcast %3 : vector<1x128xf32> to vector<512x128xf32>
    %5 = arith.mulf %2, %4 : vector<512x128xf32>
    %c0_5 = arith.constant 0 : index
    %c0_6 = arith.constant 0 : index
    %6 = vector.load %arg4[%c0_5, %c0_6] : memref<1x128xf32, #tpu.memory_space<vmem>>, vector<1x128xf32>
    %7 = vector.broadcast %6 : vector<1x128xf32> to vector<512x128xf32>
    %8 = arith.addf %5, %7 : vector<512x128xf32>
    %cst_7 = arith.constant 0.000000e+00 : f32
    %9 = vector.broadcast %cst_7 : f32 to vector<512x128xf32>
    %10 = arith.maximumf %8, %9 : vector<512x128xf32>
    %11 = arith.truncf %10 : vector<512x128xf32> to vector<512x128xbf16>
    %c0_8 = arith.constant 0 : index
    %c0_9 = arith.constant 0 : index
    %12 = vector.load %arg5[%c0_8, %c0_9] : memref<512x128xbf16, #tpu.memory_space<vmem>>, vector<512x128xbf16>
    tpu.vector_store %arg5[%c0_8, %c0_9], %11 {strides = array<i32>} : memref<512x128xbf16, #tpu.memory_space<vmem>>, vector<512x128xbf16>,
    return
  }
  func.func @transform_0(%arg0: i32) -> (i32, i32) {
    %c0_i32 = arith.constant 0 : i32
    %c0_i32_0 = arith.constant 0 : i32
    return %arg0, %c0_i32 : i32, i32
  }
  func.func @transform_1(%arg0: i32) -> (i32, i32) {
    %c0_i32 = arith.constant 0 : i32
    %c0_i32_0 = arith.constant 0 : i32
    %c0_i32_1 = arith.constant 0 : i32
    return %c0_i32, %c0_i32_0 : i32, i32
  }
  func.func @transform_2(%arg0: i32) -> (i32, i32) {
    %c0_i32 = arith.constant 0 : i32
    %c0_i32_0 = arith.constant 0 : i32
    %c0_i32_1 = arith.constant 0 : i32
    return %c0_i32, %c0_i32_0 : i32, i32
  }
  func.func @transform_3(%arg0: i32) -> (i32, i32) {
    %c0_i32 = arith.constant 0 : i32
    %c0_i32_0 = arith.constant 0 : i32
    %c0_i32_1 = arith.constant 0 : i32
    return %c0_i32, %c0_i32_0 : i32, i32
  }
  func.func @transform_4(%arg0: i32) -> (i32, i32) {
    %c0_i32 = arith.constant 0 : i32
    %c0_i32_0 = arith.constant 0 : i32
    return %arg0, %c0_i32 : i32, i32
  }
}

</mosaic_0001>

<llo_original>
// kernel: residual_block_forward.2
$region0: #{residual_block_forward.2}
  #allocation0 [shape = 'u32[]', space=smem, size = 0x4, offset = 0x4, fixed_abs, tag = 'smem constant byte address 0x4 - core index']
  #allocation1 [shape = 'u32[144,128]{1,0:T(1,128)}', space=vmem, size = 0x12000, scoped, tag = 'internal scratch']
  %s0 = inlined_call_operand.vmem [shape: bf16[512,36], index: 0, kind: input, shape index: {}]
  %s1 = inlined_call_operand.vmem [shape: bf16[36,128], index: 1, kind: input, shape index: {}]
  %s2 = inlined_call_operand.vmem [shape: f32[1,1,128], index: 2, kind: output, shape index: {0}]
  %s3 = inlined_call_operand.vmem [shape: f32[1,1,128], index: 3, kind: output, shape index: {1}]
  %4 = xla_tuple %s2, %s3
  %s5 = sld [smem:[#allocation0]]
  $region30: #{residual_block_forward.2} parent=0
    _
  %s7 = ssub.s32 1, %s5
  %s8 = scalar_select 0, %s7, %s5
  // Predicated region
  $region2: #{residual_block_forward.2} parent=0 // pred_check
    _
  $region3: #{residual_block_forward.2} parent=0 // pred_check_branch
    %10 = sbr.rel (0) target = $region5
  $region4: #{residual_block_forward.2} parent=0 // pred_region
    %s11 = sadd.s32 0, 0
    %s12 = smul.u32 64, %s11
    %p13 = scmp.lt.s32.totalorder %s12, 63
    %s14 = scalar_select %p13, %s12, 63
    %s15 = smul.addr %s14, 4
    %s16 = scalar_lea.vmem %s0, %s15
    %s17 = sadd.s32 0, 0
    %s18 = smul.u32 64, %s17
  $region5: #{residual_block_forward.2} parent=0 // pred_fallthru
    _
  // Predicated region
  $region6: #{residual_block_forward.2} parent=0 // pred_check
    _
  $region7: #{residual_block_forward.2} parent=0 // pred_check_branch
    %20 = sbr.rel (0) target = $region9
  $region8: #{residual_block_forward.2} parent=0 // pred_region
    _
  $region9: #{residual_block_forward.2} parent=0 // pred_fallthru
    _
  %s21 = sadd.s32 0, 0
  %s22 = smul.u32 64, %s21
  %p23 = scmp.lt.s32.totalorder %s22, 63
  %s24 = scalar_select %p23, %s22, 63
  %s25 = smul.addr %s24, 4
  %s26 = scalar_lea.vmem %s0, %s25
  %s27 = sadd.s32 0, 0
  %s28 = smul.u32 64, %s27
  %p29 = scmp.lt.s32.totalorder %s28, 63
  %s30 = scalar_select %p29, %s28, 63
  %s31 = smul.addr %s30, 4
  %s32 = scalar_lea.vmem %s0, %s31
  %s33 = sadd.s32 0, 0
  %s34 = smul.u32 64, %s33
  %p36 = scmp.eq.s32.totalorder 0, 0
  // Predicated region
  $region10: #{residual_block_forward.2} parent=0 // pred_check
    %p37 = pneg %p36
  $region11: #{residual_block_forward.2} parent=0 // pred_check_branch
    %39 = sbr.rel (%p37) target = $region13
  $region12: #{residual_block_forward.2} parent=0 // pred_region
    %40 = vst [vmem:[%s2] sm:$0x1] 0.0
    %41 = vst [vmem:[%s3] sm:$0x1] 0.0
  $region13: #{residual_block_forward.2} parent=0 // pred_fallthru
    _
  %v42 = vld [vmem:[%s32] sm:$0xf]
  %v43 = vld [vmem:[%s32 + $0x4] sm:$0xf]
  %v44 = vld [vmem:[%s32 + $0x8] sm:$0xf]
  %v45 = vld [vmem:[%s32 + $0xc] sm:$0xf]
  %v46 = vld [vmem:[%s32 + $0x10] sm:$0xf]
  %v47 = vld [vmem:[%s32 + $0x14] sm:$0xf]
  %v48 = vld [vmem:[%s32 + $0x18] sm:$0xf]
  %v49 = vld [vmem:[%s32 + $0x1c] sm:$0xf]
  %v50 = vld [vmem:[%s32 + $0x20] sm:$0xf]
  %v51 = vld [vmem:[%s32 + $0x24] sm:$0xf]
  %v52 = vld [vmem:[%s32 + $0x28] sm:$0xf]
  %v53 = vld [vmem:[%s32 + $0x2c] sm:$0xf]
  %v54 = vld [vmem:[%s32 + $0x30] sm:$0xf]
  %v55 = vld [vmem:[%s32 + $0x34] sm:$0xf]
  %v56 = vld [vmem:[%s32 + $0x38] sm:$0xf]
  %v57 = vld [vmem:[%s32 + $0x3c] sm:$0xf]
  %v58 = vld [vmem:[%s32 + $0x40] sm:$0xf]
  %v59 = vld [vmem:[%s32 + $0x44] sm:$0xf]
  %v60 = vld [vmem:[%s32 + $0x48] sm:$0xf]
  %v61 = vld [vmem:[%s32 + $0x4c] sm:$0xf]
  %v62 = vld [vmem:[%s32 + $0x50] sm:$0xf]
  %v63 = vld [vmem:[%s32 + $0x54] sm:$0xf]
  %v64 = vld [vmem:[%s32 + $0x58] sm:$0xf]
  %v65 = vld [vmem:[%s32 + $0x5c] sm:$0xf]
  %v66 = vld [vmem:[%s32 + $0x60] sm:$0xf]
  %v67 = vld [vmem:[%s32 + $0x64] sm:$0xf]
  %v68 = vld [vmem:[%s32 + $0x68] sm:$0xf]
  %v69 = vld [vmem:[%s32 + $0x6c] sm:$0xf]
  %v70 = vld [vmem:[%s32 + $0x70] sm:$0xf]
  %v71 = vld [vmem:[%s32 + $0x74] sm:$0xf]
  %v72 = vld [vmem:[%s32 + $0x78] sm:$0xf]
  %v73 = vld [vmem:[%s32 + $0x7c] sm:$0xf]
  %v74 = vld [vmem:[%s32 + $0x80] sm:$0xf]
  %v75 = vld [vmem:[%s32 + $0x84] sm:$0xf]
  %v76 = vld [vmem:[%s32 + $0x88] sm:$0xf]
  %v77 = vld [vmem:[%s32 + $0x8c] sm:$0xf]
  %v78 = vld [vmem:[%s32 + $0x90] sm:$0xf]
  %v79 = vld [vmem:[%s32 + $0x94] sm:$0xf]
  %v80 = vld [vmem:[%s32 + $0x98] sm:$0xf]
  %v81 = vld [vmem:[%s32 + $0x9c] sm:$0xf]
  %v82 = vld [vmem:[%s32 + $0xa0] sm:$0xf]
  %v83 = vld [vmem:[%s32 + $0xa4] sm:$0xf]
  %v84 = vld [vmem:[%s32 + $0xa8] sm:$0xf]
  %v85 = vld [vmem:[%s32 + $0xac] sm:$0xf]
  %v86 = vld [vmem:[%s32 + $0xb0] sm:$0xf]
  %v87 = vld [vmem:[%s32 + $0xb4] sm:$0xf]
  %v88 = vld [vmem:[%s32 + $0xb8] sm:$0xf]
  %v89 = vld [vmem:[%s32 + $0xbc] sm:$0xf]
  %v90 = vld [vmem:[%s32 + $0xc0] sm:$0xf]
  %v91 = vld [vmem:[%s32 + $0xc4] sm:$0xf]
  %v92 = vld [vmem:[%s32 + $0xc8] sm:$0xf]
  %v93 = vld [vmem:[%s32 + $0xcc] sm:$0xf]
  %v94 = vld [vmem:[%s32 + $0xd0] sm:$0xf]
  %v95 = vld [vmem:[%s32 + $0xd4] sm:$0xf]
  %v96 = vld [vmem:[%s32 + $0xd8] sm:$0xf]
  %v97 = vld [vmem:[%s32 + $0xdc] sm:$0xf]
  %v98 = vld [vmem:[%s32 + $0xe0] sm:$0xf]
  %v99 = vld [vmem:[%s32 + $0xe4] sm:$0xf]
  %v100 = vld [vmem:[%s32 + $0xe8] sm:$0xf]
  %v101 = vld [vmem:[%s32 + $0xec] sm:$0xf]
  %v102 = vld [vmem:[%s32 + $0xf0] sm:$0xf]
  %v103 = vld [vmem:[%s32 + $0xf4] sm:$0xf]
  %v104 = vld [vmem:[%s32 + $0xf8] sm:$0xf]
  %v105 = vld [vmem:[%s32 + $0xfc] sm:$0xf]
  %v106 = vld [vmem:[%s1] sm:$0xf]
  %v107 = vld [vmem:[%s1 + $0x4] sm:$0xf]
  %v108 = vld [vmem:[%s1 + $0x8] sm:$0xf]
  %v109 = vld [vmem:[%s1 + $0xc] sm:$0xf]
  %v110 = vld [vmem:[%s1 + $0x10] sm:$0x3]
  %v175 = vunpack.c.l.b16 %v42
  %v176 = vunpack.c.l.b16 %v43
  %v177 = vunpack.c.l.b16 %v44
  %v178 = vunpack.c.l.b16 %v45
  %v179 = vunpack.c.l.b16 %v46
  %v180 = vunpack.c.l.b16 %v47
  %v181 = vunpack.c.l.b16 %v48
  %v182 = vunpack.c.l.b16 %v49
  %v183 = vunpack.c.l.b16 %v50
  %v184 = vunpack.c.l.b16 %v51
  %v185 = vunpack.c.l.b16 %v52
  %v186 = vunpack.c.l.b16 %v53
  %v187 = vunpack.c.l.b16 %v54
  %v188 = vunpack.c.l.b16 %v55
  %v189 = vunpack.c.l.b16 %v56
  %v190 = vunpack.c.l.b16 %v57
  %v191 = vunpack.c.l.b16 %v58
  %v192 = vunpack.c.l.b16 %v59
  %v193 = vunpack.c.l.b16 %v60
  %v194 = vunpack.c.l.b16 %v61
  %v195 = vunpack.c.l.b16 %v62
  %v196 = vunpack.c.l.b16 %v63
  %v197 = vunpack.c.l.b16 %v64
  %v198 = vunpack.c.l.b16 %v65
  %v199 = vunpack.c.l.b16 %v66
  %v200 = vunpack.c.l.b16 %v67
  %v201 = vunpack.c.l.b16 %v68
  %v202 = vunpack.c.l.b16 %v69
  %v203 = vunpack.c.l.b16 %v70
  %v204 = vunpack.c.l.b16 %v71
  %v205 = vunpack.c.l.b16 %v72
  %v206 = vunpack.c.l.b16 %v73
  %v207 = vunpack.c.l.b16 %v74
  %v208 = vunpack.c.l.b16 %v75
  %v209 = vunpack.c.l.b16 %v76
  %v210 = vunpack.c.l.b16 %v77
  %v211 = vunpack.c.l.b16 %v78
  %v212 = vunpack.c.l.b16 %v79
  %v213 = vunpack.c.l.b16 %v80
  %v214 = vunpack.c.l.b16 %v81
  %v215 = vunpack.c.l.b16 %v82
  %v216 = vunpack.c.l.b16 %v83
  %v217 = vunpack.c.l.b16 %v84
  %v218 = vunpack.c.l.b16 %v85
  %v219 = vunpack.c.l.b16 %v86
  %v220 = vunpack.c.l.b16 %v87
  %v221 = vunpack.c.l.b16 %v88
  %v222 = vunpack.c.l.b16 %v89
  %v223 = vunpack.c.l.b16 %v90
  %v224 = vunpack.c.l.b16 %v91
  %v225 = vunpack.c.l.b16 %v92
  %v226 = vunpack.c.l.b16 %v93
  %v227 = vunpack.c.l.b16 %v94
  %v228 = vunpack.c.l.b16 %v95
  %v229 = vunpack.c.l.b16 %v96
  %v230 = vunpack.c.l.b16 %v97
  %v231 = vunpack.c.l.b16 %v98
  %v232 = vunpack.c.l.b16 %v99
  %v233 = vunpack.c.l.b16 %v100
  %v234 = vunpack.c.l.b16 %v101
  %v235 = vunpack.c.l.b16 %v102
  %v236 = vunpack.c.l.b16 %v103
  %v237 = vunpack.c.l.b16 %v104
  %v238 = vunpack.c.l.b16 %v105
  %v239 = vpack.c.b16 %v176, %v175
  %v240 = vpack.c.b16 %v178, %v177
  %v241 = vpack.c.b16 %v180, %v179
  %v242 = vpack.c.b16 %v182, %v181
  %v243 = vpack.c.b16 %v184, %v183
  %v244 = vpack.c.b16 %v186, %v185
  %v245 = vpack.c.b16 %v188, %v187
  %v246 = vpack.c.b16 %v190, %v189
  %v247 = vpack.c.b16 %v192, %v191
  %v248 = vpack.c.b16 %v194, %v193
  %v249 = vpack.c.b16 %v196, %v195
  %v250 = vpack.c.b16 %v198, %v197
  %v251 = vpack.c.b16 %v200, %v199
  %v252 = vpack.c.b16 %v202, %v201
  %v253 = vpack.c.b16 %v204, %v203
  %v254 = vpack.c.b16 %v206, %v205
  %v255 = vpack.c.b16 %v208, %v207
  %v256 = vpack.c.b16 %v210, %v209
  %v257 = vpack.c.b16 %v212, %v211
  %v258 = vpack.c.b16 %v214, %v213
  %v259 = vpack.c.b16 %v216, %v215
  %v260 = vpack.c.b16 %v218, %v217
  %v261 = vpack.c.b16 %v220, %v219
  %v262 = vpack.c.b16 %v222, %v221
  %v263 = vpack.c.b16 %v224, %v223
  %v264 = vpack.c.b16 %v226, %v225
  %v265 = vpack.c.b16 %v228, %v227
  %v266 = vpack.c.b16 %v230, %v229
  %v267 = vpack.c.b16 %v232, %v231
  %v268 = vpack.c.b16 %v234, %v233
  %v269 = vpack.c.b16 %v236, %v235
  %v270 = vpack.c.b16 %v238, %v237
  %v276 = vunpack.c.l.b16 %v106
  %v277 = vunpack.c.l.b16 %v107
  %v278 = vunpack.c.l.b16 %v108
  %v279 = vunpack.c.l.b16 %v109
  %v280 = vunpack.c.l.b16 %v110
  %v281 = vpack.c.b16 %v277, %v276
  %v282 = vpack.c.b16 %v279, %v278
  %v283 = vpack.c.b16 %v280, %v280
  %vm286 = vcmask 293888
  %v288 = vsel %vm286, %v239, 0
  %v291 = vsel %vm286, %v240, 0
  %v294 = vsel %vm286, %v241, 0
  %v297 = vsel %vm286, %v242, 0
  %v300 = vsel %vm286, %v243, 0
  %v303 = vsel %vm286, %v244, 0
  %v306 = vsel %vm286, %v245, 0
  %v309 = vsel %vm286, %v246, 0
  %v312 = vsel %vm286, %v247, 0
  %v315 = vsel %vm286, %v248, 0
  %v318 = vsel %vm286, %v249, 0
  %v321 = vsel %vm286, %v250, 0
  %v324 = vsel %vm286, %v251, 0
  %v327 = vsel %vm286, %v252, 0
  %v330 = vsel %vm286, %v253, 0
  %v333 = vsel %vm286, %v254, 0
  %v336 = vsel %vm286, %v255, 0
  %v339 = vsel %vm286, %v256, 0
  %v342 = vsel %vm286, %v257, 0
  %v345 = vsel %vm286, %v258, 0
  %v348 = vsel %vm286, %v259, 0
  %v351 = vsel %vm286, %v260, 0
  %v354 = vsel %vm286, %v261, 0
  %v357 = vsel %vm286, %v262, 0
  %v360 = vsel %vm286, %v263, 0
  %v363 = vsel %vm286, %v264, 0
  %v366 = vsel %vm286, %v265, 0
  %v369 = vsel %vm286, %v266, 0
  %v372 = vsel %vm286, %v267, 0
  %v375 = vsel %vm286, %v268, 0
  %v378 = vsel %vm286, %v269, 0
  %v381 = vsel %vm286, %v270, 0
  %vm383 = vcmask 1041408
  %v385 = vsel %vm383, %v283, 0
  %387 = vmatprep.subr.bf16.mxu0 0
  %388 = vmatpush1.bf16.msra.mxu0 %v281
  %389 = vmatprep.subr.bf16.mxu0 0
  %390 = vmatpush1.bf16.msra.mxu0 %v282
  %391 = vmatprep.subr.bf16.mxu0 0
  %392 = vmatpush1.bf16.msra.mxu0 %v385
  %393 = vmatprep.subr.bf16.mxu0 0
  %394 = vmatpush1.bf16.msra.mxu0 0
  %395 = vmatprep.subr.bf16.mxu0 0
  %396 = vmatpush1.bf16.msra.mxu0 0
  %397 = vmatprep.subr.bf16.mxu0 0
  %398 = vmatpush1.bf16.msra.mxu0 0
  %399 = vmatprep.subr.bf16.mxu0 0
  %400 = vmatpush1.bf16.msra.mxu0 0
  %401 = vmatprep.subr.bf16.mxu0 0
  %402 = vmatpush1.bf16.msra.mxu0 0
  %403 = vmatprep.subr.bf16.mxu0 0
  %404 = vmatpush1.bf16.msra.mxu0 0
  %405 = vmatprep.subr.bf16.mxu0 0
  %406 = vmatpush1.bf16.msra.mxu0 0
  %407 = vmatprep.subr.bf16.mxu0 0
  %408 = vmatpush1.bf16.msra.mxu0 0
  %409 = vmatprep.subr.bf16.mxu0 0
  %410 = vmatpush1.bf16.msra.mxu0 0
  %411 = vmatprep.subr.bf16.mxu0 0
  %412 = vmatpush1.bf16.msra.mxu0 0
  %413 = vmatprep.subr.bf16.mxu0 0
  %414 = vmatpush1.bf16.msra.mxu0 0
  %415 = vmatprep.subr.bf16.mxu0 0
  %416 = vmatpush1.bf16.msra.mxu0 0
  %417 = vmatprep.subr.bf16.mxu0 0
  %418 = vmatpush1.bf16.msra.mxu0 0
  %419 = vmatprep.mubr.bf16.mxu0 0
  %420 = vmatmul.mubr.bf16.gmra.mrb[0].mxu0 %v288
  %v421 = vpop.f32.mrb[0].mxu0
  %v422 = vadd.f32 0.0, %v421
  %v423 = vpop.f32.mrb[0].mxu0
  %v424 = vpop.f32.mrb[0].mxu0
  %v425 = vadd.f32 0.0, %v424
  %v426 = vpop.f32.mrb[0].mxu0
  %427 = vmatprep.mubr.bf16.mxu0 0
  %428 = vmatmul.mubr.bf16.gmra.mrb[0].mxu0 %v291
  %v429 = vpop.f32.mrb[0].mxu0
  %v430 = vadd.f32 0.0, %v429
  %v431 = vpop.f32.mrb[0].mxu0
  %v432 = vpop.f32.mrb[0].mxu0
  %v433 = vadd.f32 0.0, %v432
  %v434 = vpop.f32.mrb[0].mxu0
  %435 = vmatprep.mubr.bf16.mxu0 0
  %436 = vmatmul.mubr.bf16.gmra.mrb[0].mxu0 %v294
  %v437 = vpop.f32.mrb[0].mxu0
  %v438 = vadd.f32 0.0, %v437
  %v439 = vpop.f32.mrb[0].mxu0
  %v440 = vpop.f32.mrb[0].mxu0
  %v441 = vadd.f32 0.0, %v440
  %v442 = vpop.f32.mrb[0].mxu0
  %443 = vmatprep.mubr.bf16.mxu0 0
  %444 = vmatmul.mubr.bf16.gmra.mrb[0].mxu0 %v297
  %v445 = vpop.f32.mrb[0].mxu0
  %v446 = vadd.f32 0.0, %v445
  %v447 = vpop.f32.mrb[0].mxu0
  %v448 = vpop.f32.mrb[0].mxu0
  %v449 = vadd.f32 0.0, %v448
  %v450 = vpop.f32.mrb[0].mxu0
  %451 = vmatprep.mubr.bf16.mxu0 0
  %452 = vmatmul.mubr.bf16.gmra.mrb[0].mxu0 %v300
  %v453 = vpop.f32.mrb[0].mxu0
  %v454 = vadd.f32 0.0, %v453
  %v455 = vpop.f32.mrb[0].mxu0
  %v456 = vpop.f32.mrb[0].mxu0
  %v457 = vadd.f32 0.0, %v456
  %v458 = vpop.f32.mrb[0].mxu0
  %459 = vmatprep.mubr.bf16.mxu0 0
  %460 = vmatmul.mubr.bf16.gmra.mrb[0].mxu0 %v303
  %v461 = vpop.f32.mrb[0].mxu0
  %v462 = vadd.f32 0.0, %v461
  %v463 = vpop.f32.mrb[0].mxu0
  %v464 = vpop.f32.mrb[0].mxu0
  %v465 = vadd.f32 0.0, %v464
  %v466 = vpop.f32.mrb[0].mxu0
  %467 = vmatprep.mubr.bf16.mxu0 0
  %468 = vmatmul.mubr.bf16.gmra.mrb[0].mxu0 %v306
  %v469 = vpop.f32.mrb[0].mxu0
  %v470 = vadd.f32 0.0, %v469
  %v471 = vpop.f32.mrb[0].mxu0
  %v472 = vpop.f32.mrb[0].mxu0
  %v473 = vadd.f32 0.0, %v472
  %v474 = vpop.f32.mrb[0].mxu0
  %475 = vmatprep.mubr.bf16.mxu0 0
  %476 = vmatmul.mubr.bf16.gmra.mrb[0].mxu0 %v309
  %v477 = vpop.f32.mrb[0].mxu0
  %v478 = vadd.f32 0.0, %v477
  %v479 = vpop.f32.mrb[0].mxu0
  %v480 = vpop.f32.mrb[0].mxu0
  %v481 = vadd.f32 0.0, %v480
  %v482 = vpop.f32.mrb[0].mxu0
  %483 = vmatprep.mubr.bf16.mxu0 0
  %484 = vmatmul.mubr.bf16.gmra.mrb[0].mxu0 %v312
  %v485 = vpop.f32.mrb[0].mxu0
  %v486 = vadd.f32 0.0, %v485
  %v487 = vpop.f32.mrb[0].mxu0
  %v488 = vpop.f32.mrb[0].mxu0
  %v489 = vadd.f32 0.0, %v488
  %v490 = vpop.f32.mrb[0].mxu0
  %491 = vmatprep.mubr.bf16.mxu0 0
  %492 = vmatmul.mubr.bf16.gmra.mrb[0].mxu0 %v315
  %v493 = vpop.f32.mrb[0].mxu0
  %v494 = vadd.f32 0.0, %v493
  %v495 = vpop.f32.mrb[0].mxu0
  %v496 = vpop.f32.mrb[0].mxu0
  %v497 = vadd.f32 0.0, %v496
  %v498 = vpop.f32.mrb[0].mxu0
  %499 = vmatprep.mubr.bf16.mxu0 0
  %500 = vmatmul.mubr.bf16.gmra.mrb[0].mxu0 %v318
  %v501 = vpop.f32.mrb[0].mxu0
  %v502 = vadd.f32 0.0, %v501
  %v503 = vpop.f32.mrb[0].mxu0
  %v504 = vpop.f32.mrb[0].mxu0
  %v505 = vadd.f32 0.0, %v504
  %v506 = vpop.f32.mrb[0].mxu0
  %507 = vmatprep.mubr.bf16.mxu0 0
  %508 = vmatmul.mubr.bf16.gmra.mrb[0].mxu0 %v321
  %v509 = vpop.f32.mrb[0].mxu0
  %v510 = vadd.f32 0.0, %v509
  %v511 = vpop.f32.mrb[0].mxu0
  %v512 = vpop.f32.mrb[0].mxu0
  %v513 = vadd.f32 0.0, %v512
  %v514 = vpop.f32.mrb[0].mxu0
  %515 = vmatprep.mubr.bf16.mxu0 0
  %516 = vmatmul.mubr.bf16.gmra.mrb[0].mxu0 %v324
  %v517 = vpop.f32.mrb[0].mxu0
  %v518 = vadd.f32 0.0, %v517
  %v519 = vpop.f32.mrb[0].mxu0
  %v520 = vpop.f32.mrb[0].mxu0
  %v521 = vadd.f32 0.0, %v520
  %v522 = vpop.f32.mrb[0].mxu0
  %523 = vmatprep.mubr.bf16.mxu0 0
  %524 = vmatmul.mubr.bf16.gmra.mrb[0].mxu0 %v327
  %v525 = vpop.f32.mrb[0].mxu0
  %v526 = vadd.f32 0.0, %v525
  %v527 = vpop.f32.mrb[0].mxu0
  %v528 = vpop.f32.mrb[0].mxu0
  %v529 = vadd.f32 0.0, %v528
  %v530 = vpop.f32.mrb[0].mxu0
  %531 = vmatprep.mubr.bf16.mxu0 0
  %532 = vmatmul.mubr.bf16.gmra.mrb[0].mxu0 %v330
  %v533 = vpop.f32.mrb[0].mxu0
  %v534 = vadd.f32 0.0, %v533
  %v535 = vpop.f32.mrb[0].mxu0
  %v536 = vpop.f32.mrb[0].mxu0
  %v537 = vadd.f32 0.0, %v536
  %v538 = vpop.f32.mrb[0].mxu0
  %539 = vmatprep.mubr.bf16.mxu0 0
  %540 = vmatmul.mubr.bf16.gmra.mrb[0].mxu0 %v333
  %v541 = vpop.f32.mrb[0].mxu0
  %v542 = vadd.f32 0.0, %v541
  %v543 = vpop.f32.mrb[0].mxu0
  %v544 = vpop.f32.mrb[0].mxu0
  %v545 = vadd.f32 0.0, %v544
  %v546 = vpop.f32.mrb[0].mxu0
  %547 = vmatprep.mubr.bf16.mxu0 0
  %548 = vmatmul.mubr.bf16.gmra.mrb[0].mxu0 %v336
  %v549 = vpop.f32.mrb[0].mxu0
  %v550 = vadd.f32 0.0, %v549
  %v551 = vpop.f32.mrb[0].mxu0
  %v552 = vpop.f32.mrb[0].mxu0
  %v553 = vadd.f32 0.0, %v552
  %v554 = vpop.f32.mrb[0].mxu0
  %555 = vmatprep.mubr.bf16.mxu0 0
  %556 = vmatmul.mubr.bf16.gmra.mrb[0].mxu0 %v339
  %v557 = vpop.f32.mrb[0].mxu0
  %v558 = vadd.f32 0.0, %v557
  %v559 = vpop.f32.mrb[0].mxu0
  %v560 = vpop.f32.mrb[0].mxu0
  %v561 = vadd.f32 0.0, %v560
  %v562 = vpop.f32.mrb[0].mxu0
  %563 = vmatprep.mubr.bf16.mxu0 0
  %564 = vmatmul.mubr.bf16.gmra.mrb[0].mxu0 %v342
  %v565 = vpop.f32.mrb[0].mxu0
  %v566 = vadd.f32 0.0, %v565
  %v567 = vpop.f32.mrb[0].mxu0
  %v568 = vpop.f32.mrb[0].mxu0
  %v569 = vadd.f32 0.0, %v568
  %v570 = vpop.f32.mrb[0].mxu0
  %571 = vmatprep.mubr.bf16.mxu0 0
  %572 = vmatmul.mubr.bf16.gmra.mrb[0].mxu0 %v345
  %v573 = vpop.f32.mrb[0].mxu0
  %v574 = vadd.f32 0.0, %v573
  %v575 = vpop.f32.mrb[0].mxu0
  %v576 = vpop.f32.mrb[0].mxu0
  %v577 = vadd.f32 0.0, %v576
  %v578 = vpop.f32.mrb[0].mxu0
  %579 = vmatprep.mubr.bf16.mxu0 0
  %580 = vmatmul.mubr.bf16.gmra.mrb[0].mxu0 %v348
  %v581 = vpop.f32.mrb[0].mxu0
  %v582 = vadd.f32 0.0, %v581
  %v583 = vpop.f32.mrb[0].mxu0
  %v584 = vpop.f32.mrb[0].mxu0
  %v585 = vadd.f32 0.0, %v584
  %v586 = vpop.f32.mrb[0].mxu0
  %587 = vmatprep.mubr.bf16.mxu0 0
  %588 = vmatmul.mubr.bf16.gmra.mrb[0].mxu0 %v351
  %v589 = vpop.f32.mrb[0].mxu0
  %v590 = vadd.f32 0.0, %v589
  %v591 = vpop.f32.mrb[0].mxu0
  %v592 = vpop.f32.mrb[0].mxu0
  %v593 = vadd.f32 0.0, %v592
  %v594 = vpop.f32.mrb[0].mxu0
  %595 = vmatprep.mubr.bf16.mxu0 0
  %596 = vmatmul.mubr.bf16.gmra.mrb[0].mxu0 %v354
  %v597 = vpop.f32.mrb[0].mxu0
  %v598 = vadd.f32 0.0, %v597
  %v599 = vpop.f32.mrb[0].mxu0
  %v600 = vpop.f32.mrb[0].mxu0
  %v601 = vadd.f32 0.0, %v600
  %v602 = vpop.f32.mrb[0].mxu0
  %603 = vmatprep.mubr.bf16.mxu0 0
  %604 = vmatmul.mubr.bf16.gmra.mrb[0].mxu0 %v357
  %v605 = vpop.f32.mrb[0].mxu0
  %v606 = vadd.f32 0.0, %v605
  %v607 = vpop.f32.mrb[0].mxu0
  %v608 = vpop.f32.mrb[0].mxu0
  %v609 = vadd.f32 0.0, %v608
  %v610 = vpop.f32.mrb[0].mxu0
  %611 = vmatprep.mubr.bf16.mxu0 0
  %612 = vmatmul.mubr.bf16.gmra.mrb[0].mxu0 %v360
  %v613 = vpop.f32.mrb[0].mxu0
  %v614 = vadd.f32 0.0, %v613
  %v615 = vpop.f32.mrb[0].mxu0
  %v616 = vpop.f32.mrb[0].mxu0
  %v617 = vadd.f32 0.0, %v616
  %v618 = vpop.f32.mrb[0].mxu0
  %619 = vmatprep.mubr.bf16.mxu0 0
  %620 = vmatmul.mubr.bf16.gmra.mrb[0].mxu0 %v363
  %v621 = vpop.f32.mrb[0].mxu0
  %v622 = vadd.f32 0.0, %v621
  %v623 = vpop.f32.mrb[0].mxu0
  %v624 = vpop.f32.mrb[0].mxu0
  %v625 = vadd.f32 0.0, %v624
  %v626 = vpop.f32.mrb[0].mxu0
  %627 = vmatprep.mubr.bf16.mxu0 0
  %628 = vmatmul.mubr.bf16.gmra.mrb[0].mxu0 %v366
  %v629 = vpop.f32.mrb[0].mxu0
  %v630 = vadd.f32 0.0, %v629
  %v631 = vpop.f32.mrb[0].mxu0
  %v632 = vpop.f32.mrb[0].mxu0
  %v633 = vadd.f32 0.0, %v632
  %v634 = vpop.f32.mrb[0].mxu0
  %635 = vmatprep.mubr.bf16.mxu0 0
  %636 = vmatmul.mubr.bf16.gmra.mrb[0].mxu0 %v369
  %v637 = vpop.f32.mrb[0].mxu0
  %v638 = vadd.f32 0.0, %v637
  %v639 = vpop.f32.mrb[0].mxu0
  %v640 = vpop.f32.mrb[0].mxu0
  %v641 = vadd.f32 0.0, %v640
  %v642 = vpop.f32.mrb[0].mxu0
  %643 = vmatprep.mubr.bf16.mxu0 0
  %644 = vmatmul.mubr.bf16.gmra.mrb[0].mxu0 %v372
  %v645 = vpop.f32.mrb[0].mxu0
  %v646 = vadd.f32 0.0, %v645
  %v647 = vpop.f32.mrb[0].mxu0
  %v648 = vpop.f32.mrb[0].mxu0
  %v649 = vadd.f32 0.0, %v648
  %v650 = vpop.f32.mrb[0].mxu0
  %651 = vmatprep.mubr.bf16.mxu0 0
  %652 = vmatmul.mubr.bf16.gmra.mrb[0].mxu0 %v375
  %v653 = vpop.f32.mrb[0].mxu0
  %v654 = vadd.f32 0.0, %v653
  %v655 = vpop.f32.mrb[0].mxu0
  %v656 = vpop.f32.mrb[0].mxu0
  %v657 = vadd.f32 0.0, %v656
  %v658 = vpop.f32.mrb[0].mxu0
  %659 = vmatprep.mubr.bf16.mxu0 0
  %660 = vmatmul.mubr.bf16.gmra.mrb[0].mxu0 %v378
  %v661 = vpop.f32.mrb[0].mxu0
  %v662 = vadd.f32 0.0, %v661
  %v663 = vpop.f32.mrb[0].mxu0
  %v664 = vpop.f32.mrb[0].mxu0
  %v665 = vadd.f32 0.0, %v664
  %v666 = vpop.f32.mrb[0].mxu0
  %667 = vmatprep.mubr.bf16.mxu0 0
  %668 = vmatmul.mubr.bf16.gmra.mrb[0].mxu0 %v381
  %v669 = vpop.f32.mrb[0].mxu0
  %v670 = vadd.f32 0.0, %v669
  %v671 = vpop.f32.mrb[0].mxu0
  %v672 = vpop.f32.mrb[0].mxu0
  %v673 = vadd.f32 0.0, %v672
  %v674 = vpop.f32.mrb[0].mxu0
  %675 = vdwg.mxu0
  %v676 = vld [vmem:[%s2] sm:$0x1]
  %v677 = vadd.f32 %v422, %v425
  %v678 = vadd.f32 %v677, %v430
  %v679 = vadd.f32 %v678, %v433
  %v680 = vadd.f32 %v679, %v438
  %v681 = vadd.f32 %v680, %v441
  %v682 = vadd.f32 %v681, %v446
  %v683 = vadd.f32 %v682, %v449
  %v684 = vadd.f32 %v683, %v454
  %v685 = vadd.f32 %v684, %v457
  %v686 = vadd.f32 %v685, %v462
  %v687 = vadd.f32 %v686, %v465
  %v688 = vadd.f32 %v687, %v470
  %v689 = vadd.f32 %v688, %v473
  %v690 = vadd.f32 %v689, %v478
  %v691 = vadd.f32 %v690, %v481
  %v692 = vadd.f32 %v691, %v486
  %v693 = vadd.f32 %v692, %v489
  %v694 = vadd.f32 %v693, %v494
  %v695 = vadd.f32 %v694, %v497
  %v696 = vadd.f32 %v695, %v502
  %v697 = vadd.f32 %v696, %v505
  %v698 = vadd.f32 %v697, %v510
  %v699 = vadd.f32 %v698, %v513
  %v700 = vadd.f32 %v699, %v518
  %v701 = vadd.f32 %v700, %v521
  %v702 = vadd.f32 %v701, %v526
  %v703 = vadd.f32 %v702, %v529
  %v704 = vadd.f32 %v703, %v534
  %v705 = vadd.f32 %v704, %v537
  %v706 = vadd.f32 %v705, %v542
  %v707 = vadd.f32 %v706, %v545
  %v708 = vadd.f32 %v707, %v550
  %v709 = vadd.f32 %v708, %v553
  %v710 = vadd.f32 %v709, %v558
  %v711 = vadd.f32 %v710, %v561
  %v712 = vadd.f32 %v711, %v566
  %v713 = vadd.f32 %v712, %v569
  %v714 = vadd.f32 %v713, %v574
  %v715 = vadd.f32 %v714, %v577
  %v716 = vadd.f32 %v715, %v582
  %v717 = vadd.f32 %v716, %v585
  %v718 = vadd.f32 %v717, %v590
  %v719 = vadd.f32 %v718, %v593
  %v720 = vadd.f32 %v719, %v598
  %v721 = vadd.f32 %v720, %v601
  %v722 = vadd.f32 %v721, %v606
  %v723 = vadd.f32 %v722, %v609
  %v724 = vadd.f32 %v723, %v614
  %v725 = vadd.f32 %v724, %v617
  %v726 = vadd.f32 %v725, %v622
  %v727 = vadd.f32 %v726, %v625
  %v728 = vadd.f32 %v727, %v630
  %v729 = vadd.f32 %v728, %v633
  %v730 = vadd.f32 %v729, %v638
  %v731 = vadd.f32 %v730, %v641
  %v732 = vadd.f32 %v731, %v646
  %v733 = vadd.f32 %v732, %v649
  %v734 = vadd.f32 %v733, %v654
  %v735 = vadd.f32 %v734, %v657
  %v736 = vadd.f32 %v735, %v662
  %v737 = vadd.f32 %v736, %v665
  %v738 = vadd.f32 %v737, %v670
  %v739 = vadd.f32 %v738, %v673
  %v740 = vrot.slane %v739, 4
  %v741 = vadd.f32 %v739, %v740
  %v742 = vrot.slane %v741, 2
  %v743 = vadd.f32 %v741, %v742
  %v744 = vrot.slane %v743, 1
  %v745 = vadd.f32 %v743, %v744
  %v746 = vadd.f32 %v676, %v745
  %747 = vst [vmem:[%s2] sm:$0x1] %v746
  %v748 = vld [vmem:[%s3] sm:$0x1]
  %v749 = vmul.f32 %v422, %v422
  %v750 = vmul.f32 %v425, %v425
  %v751 = vmul.f32 %v430, %v430
  %v752 = vmul.f32 %v433, %v433
  %v753 = vmul.f32 %v438, %v438
  %v754 = vmul.f32 %v441, %v441
  %v755 = vmul.f32 %v446, %v446
  %v756 = vmul.f32 %v449, %v449
  %v757 = vmul.f32 %v454, %v454
  %v758 = vmul.f32 %v457, %v457
  %v759 = vmul.f32 %v462, %v462
  %v760 = vmul.f32 %v465, %v465
  %v761 = vmul.f32 %v470, %v470
  %v762 = vmul.f32 %v473, %v473
  %v763 = vmul.f32 %v478, %v478
  %v764 = vmul.f32 %v481, %v481
  %v765 = vmul.f32 %v486, %v486
  %v766 = vmul.f32 %v489, %v489
  %v767 = vmul.f32 %v494, %v494
  %v768 = vmul.f32 %v497, %v497
  %v769 = vmul.f32 %v502, %v502
  %v770 = vmul.f32 %v505, %v505
  %v771 = vmul.f32 %v510, %v510
  %v772 = vmul.f32 %v513, %v513
  %v773 = vmul.f32 %v518, %v518
  %v774 = vmul.f32 %v521, %v521
  %v775 = vmul.f32 %v526, %v526
  %v776 = vmul.f32 %v529, %v529
  %v777 = vmul.f32 %v534, %v534
  %v778 = vmul.f32 %v537, %v537
  %v779 = vmul.f32 %v542, %v542
  %v780 = vmul.f32 %v545, %v545
  %v781 = vmul.f32 %v550, %v550
  %v782 = vmul.f32 %v553, %v553
  %v783 = vmul.f32 %v558, %v558
  %v784 = vmul.f32 %v561, %v561
  %v785 = vmul.f32 %v566, %v566
  %v786 = vmul.f32 %v569, %v569
  %v787 = vmul.f32 %v574, %v574
  %v788 = vmul.f32 %v577, %v577
  %v789 = vmul.f32 %v582, %v582
  %v790 = vmul.f32 %v585, %v585
  %v791 = vmul.f32 %v590, %v590
  %v792 = vmul.f32 %v593, %v593
  %v793 = vmul.f32 %v598, %v598
  %v794 = vmul.f32 %v601, %v601
  %v795 = vmul.f32 %v606, %v606
  %v796 = vmul.f32 %v609, %v609
  %v797 = vmul.f32 %v614, %v614
  %v798 = vmul.f32 %v617, %v617
  %v799 = vmul.f32 %v622, %v622
  %v800 = vmul.f32 %v625, %v625
  %v801 = vmul.f32 %v630, %v630
  %v802 = vmul.f32 %v633, %v633
  %v803 = vmul.f32 %v638, %v638
  %v804 = vmul.f32 %v641, %v641
  %v805 = vmul.f32 %v646, %v646
  %v806 = vmul.f32 %v649, %v649
  %v807 = vmul.f32 %v654, %v654
  %v808 = vmul.f32 %v657, %v657
  %v809 = vmul.f32 %v662, %v662
  %v810 = vmul.f32 %v665, %v665
  %v811 = vmul.f32 %v670, %v670
  %v812 = vmul.f32 %v673, %v673
  %v813 = vadd.f32 %v749, %v750
  %v814 = vadd.f32 %v813, %v751
  %v815 = vadd.f32 %v814, %v752
  %v816 = vadd.f32 %v815, %v753
  %v817 = vadd.f32 %v816, %v754
  %v818 = vadd.f32 %v817, %v755
  %v819 = vadd.f32 %v818, %v756
  %v820 = vadd.f32 %v819, %v757
  %v821 = vadd.f32 %v820, %v758
  %v822 = vadd.f32 %v821, %v759
  %v823 = vadd.f32 %v822, %v760
  %v824 = vadd.f32 %v823, %v761
  %v825 = vadd.f32 %v824, %v762
  %v826 = vadd.f32 %v825, %v763
  %v827 = vadd.f32 %v826, %v764
  %v828 = vadd.f32 %v827, %v765
  %v829 = vadd.f32 %v828, %v766
  %v830 = vadd.f32 %v829, %v767
  %v831 = vadd.f32 %v830, %v768
  %v832 = vadd.f32 %v831, %v769
  %v833 = vadd.f32 %v832, %v770
  %v834 = vadd.f32 %v833, %v771
  %v835 = vadd.f32 %v834, %v772
  %v836 = vadd.f32 %v835, %v773
  %v837 = vadd.f32 %v836, %v774
  %v838 = vadd.f32 %v837, %v775
  %v839 = vadd.f32 %v838, %v776
  %v840 = vadd.f32 %v839, %v777
  %v841 = vadd.f32 %v840, %v778
  %v842 = vadd.f32 %v841, %v779
  %v843 = vadd.f32 %v842, %v780
  %v844 = vadd.f32 %v843, %v781
  %v845 = vadd.f32 %v844, %v782
  %v846 = vadd.f32 %v845, %v783
  %v847 = vadd.f32 %v846, %v784
  %v848 = vadd.f32 %v847, %v785
  %v849 = vadd.f32 %v848, %v786
  %v850 = vadd.f32 %v849, %v787
  %v851 = vadd.f32 %v850, %v788
  %v852 = vadd.f32 %v851, %v789
  %v853 = vadd.f32 %v852, %v790
  %v854 = vadd.f32 %v853, %v791
  %v855 = vadd.f32 %v854, %v792
  %v856 = vadd.f32 %v855, %v793
  %v857 = vadd.f32 %v856, %v794
  %v858 = vadd.f32 %v857, %v795
  %v859 = vadd.f32 %v858, %v796
  %v860 = vadd.f32 %v859, %v797
  %v861 = vadd.f32 %v860, %v798
  %v862 = vadd.f32 %v861, %v799
  %v863 = vadd.f32 %v862, %v800
  %v864 = vadd.f32 %v863, %v801
  %v865 = vadd.f32 %v864, %v802
  %v866 = vadd.f32 %v865, %v803
  %v867 = vadd.f32 %v866, %v804
  %v868 = vadd.f32 %v867, %v805
  %v869 = vadd.f32 %v868, %v806
  %v870 = vadd.f32 %v869, %v807
  %v871 = vadd.f32 %v870, %v808
  %v872 = vadd.f32 %v871, %v809
  %v873 = vadd.f32 %v872, %v810
  %v874 = vadd.f32 %v873, %v811
  %v875 = vadd.f32 %v874, %v812
  %v876 = vrot.slane %v875, 4
  %v877 = vadd.f32 %v875, %v876
  %v878 = vrot.slane %v877, 2
  %v879 = vadd.f32 %v877, %v878
  %v880 = vrot.slane %v879, 1
  %v881 = vadd.f32 %v879, %v880
  %v882 = vadd.f32 %v748, %v881
  %883 = vst [vmem:[%s3] sm:$0x1] %v882
  // Predicated region
  $region14: #{residual_block_forward.2} parent=0 // pred_check
    _
  $region15: #{residual_block_forward.2} parent=0 // pred_check_branch
    %885 = sbr.rel (0) target = $region17
  $region16: #{residual_block_forward.2} parent=0 // pred_region
    _
  $region17: #{residual_block_forward.2} parent=0 // pred_fallthru
    _
  // Predicated region
  $region18: #{residual_block_forward.2} parent=0 // pred_check
    _
  $region19: #{residual_block_forward.2} parent=0 // pred_check_branch
    %887 = sbr.rel (0) target = $region21
  $region20: #{residual_block_forward.2} parent=0 // pred_region
    _
  $region21: #{residual_block_forward.2} parent=0 // pred_fallthru
    _
  // Predicated region
  $region22: #{residual_block_forward.2} parent=0 // pred_check
    _
  $region23: #{residual_block_forward.2} parent=0 // pred_check_branch
    %889 = sbr.rel (0) target = $region25
  $region24: #{residual_block_forward.2} parent=0 // pred_region
    _
  $region25: #{residual_block_forward.2} parent=0 // pred_fallthru
    _
  // Predicated region
  $region26: #{residual_block_forward.2} parent=0 // pred_check
    _
  $region27: #{residual_block_forward.2} parent=0 // pred_check_branch
    %891 = sbr.rel (0) target = $region29
  $region28: #{residual_block_forward.2} parent=0 // pred_region
    _
  $region29: #{residual_block_forward.2} parent=0 // pred_fallthru
    _

// kernel: residual_block_forward.3
$region0: #{residual_block_forward.3}
  #allocation0 [shape = 'u32[]', space=smem, size = 0x4, offset = 0x4, fixed_abs, tag = 'smem constant byte address 0x4 - core index']
  #allocation1 [shape = 'u32[144,128]{1,0:T(1,128)}', space=vmem, size = 0x12000, scoped, tag = 'internal scratch']
  %s0 = inlined_call_operand.vmem [shape: bf16[512,36], index: 0, kind: input, shape index: {}]
  %s1 = inlined_call_operand.vmem [shape: bf16[36,128], index: 1, kind: input, shape index: {}]
  %s2 = inlined_call_operand.vmem [shape: f32[1,128], index: 2, kind: input, shape index: {}]
  %s3 = inlined_call_operand.vmem [shape: f32[1,128], index: 3, kind: input, shape index: {}]
  %s4 = inlined_call_operand.vmem [shape: bf16[512,128], index: 4, kind: output, shape index: {}]
  %s5 = sld [smem:[#allocation0]]
  $region26: #{residual_block_forward.3} parent=0
    _
  %s7 = ssub.s32 1, %s5
  %s8 = scalar_select 0, %s7, %s5
  // Predicated region
  $region2: #{residual_block_forward.3} parent=0 // pred_check
    _
  $region3: #{residual_block_forward.3} parent=0 // pred_check_branch
    %10 = sbr.rel (0) target = $region5
  $region4: #{residual_block_forward.3} parent=0 // pred_region
    _
  $region5: #{residual_block_forward.3} parent=0 // pred_fallthru
    _
  // Predicated region
  $region6: #{residual_block_forward.3} parent=0 // pred_check
    _
  $region7: #{residual_block_forward.3} parent=0 // pred_check_branch
    %12 = sbr.rel (0) target = $region9
  $region8: #{residual_block_forward.3} parent=0 // pred_region
    _
  $region9: #{residual_block_forward.3} parent=0 // pred_fallthru
    _
  // Predicated region
  $region10: #{residual_block_forward.3} parent=0 // pred_check
    _
  $region11: #{residual_block_forward.3} parent=0 // pred_check_branch
    %14 = sbr.rel (0) target = $region13
  $region12: #{residual_block_forward.3} parent=0 // pred_region
    _
  $region13: #{residual_block_forward.3} parent=0 // pred_fallthru
    _
  // Predicated region
  $region14: #{residual_block_forward.3} parent=0 // pred_check
    _
  $region15: #{residual_block_forward.3} parent=0 // pred_check_branch
    %16 = sbr.rel (0) target = $region17
  $region16: #{residual_block_forward.3} parent=0 // pred_region
    _
  $region17: #{residual_block_forward.3} parent=0 // pred_fallthru
    _
  %v18 = vld [vmem:[%s0] sm:$0xf]
  %v19 = vld [vmem:[%s0 + $0x4] sm:$0xf]
  %v20 = vld [vmem:[%s0 + $0x8] sm:$0xf]
  %v21 = vld [vmem:[%s0 + $0xc] sm:$0xf]
  %v22 = vld [vmem:[%s0 + $0x10] sm:$0xf]
  %v23 = vld [vmem:[%s0 + $0x14] sm:$0xf]
  %v24 = vld [vmem:[%s0 + $0x18] sm:$0xf]
  %v25 = vld [vmem:[%s0 + $0x1c] sm:$0xf]
  %v26 = vld [vmem:[%s0 + $0x20] sm:$0xf]
  %v27 = vld [vmem:[%s0 + $0x24] sm:$0xf]
  %v28 = vld [vmem:[%s0 + $0x28] sm:$0xf]
  %v29 = vld [vmem:[%s0 + $0x2c] sm:$0xf]
  %v30 = vld [vmem:[%s0 + $0x30] sm:$0xf]
  %v31 = vld [vmem:[%s0 + $0x34] sm:$0xf]
  %v32 = vld [vmem:[%s0 + $0x38] sm:$0xf]
  %v33 = vld [vmem:[%s0 + $0x3c] sm:$0xf]
  %v34 = vld [vmem:[%s0 + $0x40] sm:$0xf]
  %v35 = vld [vmem:[%s0 + $0x44] sm:$0xf]
  %v36 = vld [vmem:[%s0 + $0x48] sm:$0xf]
  %v37 = vld [vmem:[%s0 + $0x4c] sm:$0xf]
  %v38 = vld [vmem:[%s0 + $0x50] sm:$0xf]
  %v39 = vld [vmem:[%s0 + $0x54] sm:$0xf]
  %v40 = vld [vmem:[%s0 + $0x58] sm:$0xf]
  %v41 = vld [vmem:[%s0 + $0x5c] sm:$0xf]
  %v42 = vld [vmem:[%s0 + $0x60] sm:$0xf]
  %v43 = vld [vmem:[%s0 + $0x64] sm:$0xf]
  %v44 = vld [vmem:[%s0 + $0x68] sm:$0xf]
  %v45 = vld [vmem:[%s0 + $0x6c] sm:$0xf]
  %v46 = vld [vmem:[%s0 + $0x70] sm:$0xf]
  %v47 = vld [vmem:[%s0 + $0x74] sm:$0xf]
  %v48 = vld [vmem:[%s0 + $0x78] sm:$0xf]
  %v49 = vld [vmem:[%s0 + $0x7c] sm:$0xf]
  %v50 = vld [vmem:[%s0 + $0x80] sm:$0xf]
  %v51 = vld [vmem:[%s0 + $0x84] sm:$0xf]
  %v52 = vld [vmem:[%s0 + $0x88] sm:$0xf]
  %v53 = vld [vmem:[%s0 + $0x8c] sm:$0xf]
  %v54 = vld [vmem:[%s0 + $0x90] sm:$0xf]
  %v55 = vld [vmem:[%s0 + $0x94] sm:$0xf]
  %v56 = vld [vmem:[%s0 + $0x98] sm:$0xf]
  %v57 = vld [vmem:[%s0 + $0x9c] sm:$0xf]
  %v58 = vld [vmem:[%s0 + $0xa0] sm:$0xf]
  %v59 = vld [vmem:[%s0 + $0xa4] sm:$0xf]
  %v60 = vld [vmem:[%s0 + $0xa8] sm:$0xf]
  %v61 = vld [vmem:[%s0 + $0xac] sm:$0xf]
  %v62 = vld [vmem:[%s0 + $0xb0] sm:$0xf]
  %v63 = vld [vmem:[%s0 + $0xb4] sm:$0xf]
  %v64 = vld [vmem:[%s0 + $0xb8] sm:$0xf]
  %v65 = vld [vmem:[%s0 + $0xbc] sm:$0xf]
  %v66 = vld [vmem:[%s0 + $0xc0] sm:$0xf]
  %v67 = vld [vmem:[%s0 + $0xc4] sm:$0xf]
  %v68 = vld [vmem:[%s0 + $0xc8] sm:$0xf]
  %v69 = vld [vmem:[%s0 + $0xcc] sm:$0xf]
  %v70 = vld [vmem:[%s0 + $0xd0] sm:$0xf]
  %v71 = vld [vmem:[%s0 + $0xd4] sm:$0xf]
  %v72 = vld [vmem:[%s0 + $0xd8] sm:$0xf]
  %v73 = vld [vmem:[%s0 + $0xdc] sm:$0xf]
  %v74 = vld [vmem:[%s0 + $0xe0] sm:$0xf]
  %v75 = vld [vmem:[%s0 + $0xe4] sm:$0xf]
  %v76 = vld [vmem:[%s0 + $0xe8] sm:$0xf]
  %v77 = vld [vmem:[%s0 + $0xec] sm:$0xf]
  %v78 = vld [vmem:[%s0 + $0xf0] sm:$0xf]
  %v79 = vld [vmem:[%s0 + $0xf4] sm:$0xf]
  %v80 = vld [vmem:[%s0 + $0xf8] sm:$0xf]
  %v81 = vld [vmem:[%s0 + $0xfc] sm:$0xf]
  %v82 = vld [vmem:[%s1] sm:$0xf]
  %v83 = vld [vmem:[%s1 + $0x4] sm:$0xf]
  %v84 = vld [vmem:[%s1 + $0x8] sm:$0xf]
  %v85 = vld [vmem:[%s1 + $0xc] sm:$0xf]
  %v86 = vld [vmem:[%s1 + $0x10] sm:$0x3]
  %v151 = vunpack.c.l.b16 %v18
  %v152 = vunpack.c.l.b16 %v19
  %v153 = vunpack.c.l.b16 %v20
  %v154 = vunpack.c.l.b16 %v21
  %v155 = vunpack.c.l.b16 %v22
  %v156 = vunpack.c.l.b16 %v23
  %v157 = vunpack.c.l.b16 %v24
  %v158 = vunpack.c.l.b16 %v25
  %v159 = vunpack.c.l.b16 %v26
  %v160 = vunpack.c.l.b16 %v27
  %v161 = vunpack.c.l.b16 %v28
  %v162 = vunpack.c.l.b16 %v29
  %v163 = vunpack.c.l.b16 %v30
  %v164 = vunpack.c.l.b16 %v31
  %v165 = vunpack.c.l.b16 %v32
  %v166 = vunpack.c.l.b16 %v33
  %v167 = vunpack.c.l.b16 %v34
  %v168 = vunpack.c.l.b16 %v35
  %v169 = vunpack.c.l.b16 %v36
  %v170 = vunpack.c.l.b16 %v37
  %v171 = vunpack.c.l.b16 %v38
  %v172 = vunpack.c.l.b16 %v39
  %v173 = vunpack.c.l.b16 %v40
  %v174 = vunpack.c.l.b16 %v41
  %v175 = vunpack.c.l.b16 %v42
  %v176 = vunpack.c.l.b16 %v43
  %v177 = vunpack.c.l.b16 %v44
  %v178 = vunpack.c.l.b16 %v45
  %v179 = vunpack.c.l.b16 %v46
  %v180 = vunpack.c.l.b16 %v47
  %v181 = vunpack.c.l.b16 %v48
  %v182 = vunpack.c.l.b16 %v49
  %v183 = vunpack.c.l.b16 %v50
  %v184 = vunpack.c.l.b16 %v51
  %v185 = vunpack.c.l.b16 %v52
  %v186 = vunpack.c.l.b16 %v53
  %v187 = vunpack.c.l.b16 %v54
  %v188 = vunpack.c.l.b16 %v55
  %v189 = vunpack.c.l.b16 %v56
  %v190 = vunpack.c.l.b16 %v57
  %v191 = vunpack.c.l.b16 %v58
  %v192 = vunpack.c.l.b16 %v59
  %v193 = vunpack.c.l.b16 %v60
  %v194 = vunpack.c.l.b16 %v61
  %v195 = vunpack.c.l.b16 %v62
  %v196 = vunpack.c.l.b16 %v63
  %v197 = vunpack.c.l.b16 %v64
  %v198 = vunpack.c.l.b16 %v65
  %v199 = vunpack.c.l.b16 %v66
  %v200 = vunpack.c.l.b16 %v67
  %v201 = vunpack.c.l.b16 %v68
  %v202 = vunpack.c.l.b16 %v69
  %v203 = vunpack.c.l.b16 %v70
  %v204 = vunpack.c.l.b16 %v71
  %v205 = vunpack.c.l.b16 %v72
  %v206 = vunpack.c.l.b16 %v73
  %v207 = vunpack.c.l.b16 %v74
  %v208 = vunpack.c.l.b16 %v75
  %v209 = vunpack.c.l.b16 %v76
  %v210 = vunpack.c.l.b16 %v77
  %v211 = vunpack.c.l.b16 %v78
  %v212 = vunpack.c.l.b16 %v79
  %v213 = vunpack.c.l.b16 %v80
  %v214 = vunpack.c.l.b16 %v81
  %v215 = vpack.c.b16 %v152, %v151
  %v216 = vpack.c.b16 %v154, %v153
  %v217 = vpack.c.b16 %v156, %v155
  %v218 = vpack.c.b16 %v158, %v157
  %v219 = vpack.c.b16 %v160, %v159
  %v220 = vpack.c.b16 %v162, %v161
  %v221 = vpack.c.b16 %v164, %v163
  %v222 = vpack.c.b16 %v166, %v165
  %v223 = vpack.c.b16 %v168, %v167
  %v224 = vpack.c.b16 %v170, %v169
  %v225 = vpack.c.b16 %v172, %v171
  %v226 = vpack.c.b16 %v174, %v173
  %v227 = vpack.c.b16 %v176, %v175
  %v228 = vpack.c.b16 %v178, %v177
  %v229 = vpack.c.b16 %v180, %v179
  %v230 = vpack.c.b16 %v182, %v181
  %v231 = vpack.c.b16 %v184, %v183
  %v232 = vpack.c.b16 %v186, %v185
  %v233 = vpack.c.b16 %v188, %v187
  %v234 = vpack.c.b16 %v190, %v189
  %v235 = vpack.c.b16 %v192, %v191
  %v236 = vpack.c.b16 %v194, %v193
  %v237 = vpack.c.b16 %v196, %v195
  %v238 = vpack.c.b16 %v198, %v197
  %v239 = vpack.c.b16 %v200, %v199
  %v240 = vpack.c.b16 %v202, %v201
  %v241 = vpack.c.b16 %v204, %v203
  %v242 = vpack.c.b16 %v206, %v205
  %v243 = vpack.c.b16 %v208, %v207
  %v244 = vpack.c.b16 %v210, %v209
  %v245 = vpack.c.b16 %v212, %v211
  %v246 = vpack.c.b16 %v214, %v213
  %v252 = vunpack.c.l.b16 %v82
  %v253 = vunpack.c.l.b16 %v83
  %v254 = vunpack.c.l.b16 %v84
  %v255 = vunpack.c.l.b16 %v85
  %v256 = vunpack.c.l.b16 %v86
  %v257 = vpack.c.b16 %v253, %v252
  %v258 = vpack.c.b16 %v255, %v254
  %v259 = vpack.c.b16 %v256, %v256
  %vm262 = vcmask 293888
  %v264 = vsel %vm262, %v215, 0
  %v267 = vsel %vm262, %v216, 0
  %v270 = vsel %vm262, %v217, 0
  %v273 = vsel %vm262, %v218, 0
  %v276 = vsel %vm262, %v219, 0
  %v279 = vsel %vm262, %v220, 0
  %v282 = vsel %vm262, %v221, 0
  %v285 = vsel %vm262, %v222, 0
  %v288 = vsel %vm262, %v223, 0
  %v291 = vsel %vm262, %v224, 0
  %v294 = vsel %vm262, %v225, 0
  %v297 = vsel %vm262, %v226, 0
  %v300 = vsel %vm262, %v227, 0
  %v303 = vsel %vm262, %v228, 0
  %v306 = vsel %vm262, %v229, 0
  %v309 = vsel %vm262, %v230, 0
  %v312 = vsel %vm262, %v231, 0
  %v315 = vsel %vm262, %v232, 0
  %v318 = vsel %vm262, %v233, 0
  %v321 = vsel %vm262, %v234, 0
  %v324 = vsel %vm262, %v235, 0
  %v327 = vsel %vm262, %v236, 0
  %v330 = vsel %vm262, %v237, 0
  %v333 = vsel %vm262, %v238, 0
  %v336 = vsel %vm262, %v239, 0
  %v339 = vsel %vm262, %v240, 0
  %v342 = vsel %vm262, %v241, 0
  %v345 = vsel %vm262, %v242, 0
  %v348 = vsel %vm262, %v243, 0
  %v351 = vsel %vm262, %v244, 0
  %v354 = vsel %vm262, %v245, 0
  %v357 = vsel %vm262, %v246, 0
  %vm359 = vcmask 1041408
  %v361 = vsel %vm359, %v259, 0
  %363 = vmatprep.subr.bf16.mxu0 0
  %364 = vmatpush1.bf16.msra.mxu0 %v257
  %365 = vmatprep.subr.bf16.mxu0 0
  %366 = vmatpush1.bf16.msra.mxu0 %v258
  %367 = vmatprep.subr.bf16.mxu0 0
  %368 = vmatpush1.bf16.msra.mxu0 %v361
  %369 = vmatprep.subr.bf16.mxu0 0
  %370 = vmatpush1.bf16.msra.mxu0 0
  %371 = vmatprep.subr.bf16.mxu0 0
  %372 = vmatpush1.bf16.msra.mxu0 0
  %373 = vmatprep.subr.bf16.mxu0 0
  %374 = vmatpush1.bf16.msra.mxu0 0
  %375 = vmatprep.subr.bf16.mxu0 0
  %376 = vmatpush1.bf16.msra.mxu0 0
  %377 = vmatprep.subr.bf16.mxu0 0
  %378 = vmatpush1.bf16.msra.mxu0 0
  %379 = vmatprep.subr.bf16.mxu0 0
  %380 = vmatpush1.bf16.msra.mxu0 0
  %381 = vmatprep.subr.bf16.mxu0 0
  %382 = vmatpush1.bf16.msra.mxu0 0
  %383 = vmatprep.subr.bf16.mxu0 0
  %384 = vmatpush1.bf16.msra.mxu0 0
  %385 = vmatprep.subr.bf16.mxu0 0
  %386 = vmatpush1.bf16.msra.mxu0 0
  %387 = vmatprep.subr.bf16.mxu0 0
  %388 = vmatpush1.bf16.msra.mxu0 0
  %389 = vmatprep.subr.bf16.mxu0 0
  %390 = vmatpush1.bf16.msra.mxu0 0
  %391 = vmatprep.subr.bf16.mxu0 0
  %392 = vmatpush1.bf16.msra.mxu0 0
  %393 = vmatprep.subr.bf16.mxu0 0
  %394 = vmatpush1.bf16.msra.mxu0 0
  %395 = vmatprep.mubr.bf16.mxu0 0
  %396 = vmatmul.mubr.bf16.gmra.mrb[0].mxu0 %v264
  %v397 = vpop.f32.mrb[0].mxu0
  %v398 = vadd.f32 0.0, %v397
  %v399 = vpop.f32.mrb[0].mxu0
  %v400 = vpop.f32.mrb[0].mxu0
  %v401 = vadd.f32 0.0, %v400
  %v402 = vpop.f32.mrb[0].mxu0
  %403 = vmatprep.mubr.bf16.mxu0 0
  %404 = vmatmul.mubr.bf16.gmra.mrb[0].mxu0 %v267
  %v405 = vpop.f32.mrb[0].mxu0
  %v406 = vadd.f32 0.0, %v405
  %v407 = vpop.f32.mrb[0].mxu0
  %v408 = vpop.f32.mrb[0].mxu0
  %v409 = vadd.f32 0.0, %v408
  %v410 = vpop.f32.mrb[0].mxu0
  %411 = vmatprep.mubr.bf16.mxu0 0
  %412 = vmatmul.mubr.bf16.gmra.mrb[0].mxu0 %v270
  %v413 = vpop.f32.mrb[0].mxu0
  %v414 = vadd.f32 0.0, %v413
  %v415 = vpop.f32.mrb[0].mxu0
  %v416 = vpop.f32.mrb[0].mxu0
  %v417 = vadd.f32 0.0, %v416
  %v418 = vpop.f32.mrb[0].mxu0
  %419 = vmatprep.mubr.bf16.mxu0 0
  %420 = vmatmul.mubr.bf16.gmra.mrb[0].mxu0 %v273
  %v421 = vpop.f32.mrb[0].mxu0
  %v422 = vadd.f32 0.0, %v421
  %v423 = vpop.f32.mrb[0].mxu0
  %v424 = vpop.f32.mrb[0].mxu0
  %v425 = vadd.f32 0.0, %v424
  %v426 = vpop.f32.mrb[0].mxu0
  %427 = vmatprep.mubr.bf16.mxu0 0
  %428 = vmatmul.mubr.bf16.gmra.mrb[0].mxu0 %v276
  %v429 = vpop.f32.mrb[0].mxu0
  %v430 = vadd.f32 0.0, %v429
  %v431 = vpop.f32.mrb[0].mxu0
  %v432 = vpop.f32.mrb[0].mxu0
  %v433 = vadd.f32 0.0, %v432
  %v434 = vpop.f32.mrb[0].mxu0
  %435 = vmatprep.mubr.bf16.mxu0 0
  %436 = vmatmul.mubr.bf16.gmra.mrb[0].mxu0 %v279
  %v437 = vpop.f32.mrb[0].mxu0
  %v438 = vadd.f32 0.0, %v437
  %v439 = vpop.f32.mrb[0].mxu0
  %v440 = vpop.f32.mrb[0].mxu0
  %v441 = vadd.f32 0.0, %v440
  %v442 = vpop.f32.mrb[0].mxu0
  %443 = vmatprep.mubr.bf16.mxu0 0
  %444 = vmatmul.mubr.bf16.gmra.mrb[0].mxu0 %v282
  %v445 = vpop.f32.mrb[0].mxu0
  %v446 = vadd.f32 0.0, %v445
  %v447 = vpop.f32.mrb[0].mxu0
  %v448 = vpop.f32.mrb[0].mxu0
  %v449 = vadd.f32 0.0, %v448
  %v450 = vpop.f32.mrb[0].mxu0
  %451 = vmatprep.mubr.bf16.mxu0 0
  %452 = vmatmul.mubr.bf16.gmra.mrb[0].mxu0 %v285
  %v453 = vpop.f32.mrb[0].mxu0
  %v454 = vadd.f32 0.0, %v453
  %v455 = vpop.f32.mrb[0].mxu0
  %v456 = vpop.f32.mrb[0].mxu0
  %v457 = vadd.f32 0.0, %v456
  %v458 = vpop.f32.mrb[0].mxu0
  %459 = vmatprep.mubr.bf16.mxu0 0
  %460 = vmatmul.mubr.bf16.gmra.mrb[0].mxu0 %v288
  %v461 = vpop.f32.mrb[0].mxu0
  %v462 = vadd.f32 0.0, %v461
  %v463 = vpop.f32.mrb[0].mxu0
  %v464 = vpop.f32.mrb[0].mxu0
  %v465 = vadd.f32 0.0, %v464
  %v466 = vpop.f32.mrb[0].mxu0
  %467 = vmatprep.mubr.bf16.mxu0 0
  %468 = vmatmul.mubr.bf16.gmra.mrb[0].mxu0 %v291
  %v469 = vpop.f32.mrb[0].mxu0
  %v470 = vadd.f32 0.0, %v469
  %v471 = vpop.f32.mrb[0].mxu0
  %v472 = vpop.f32.mrb[0].mxu0
  %v473 = vadd.f32 0.0, %v472
  %v474 = vpop.f32.mrb[0].mxu0
  %475 = vmatprep.mubr.bf16.mxu0 0
  %476 = vmatmul.mubr.bf16.gmra.mrb[0].mxu0 %v294
  %v477 = vpop.f32.mrb[0].mxu0
  %v478 = vadd.f32 0.0, %v477
  %v479 = vpop.f32.mrb[0].mxu0
  %v480 = vpop.f32.mrb[0].mxu0
  %v481 = vadd.f32 0.0, %v480
  %v482 = vpop.f32.mrb[0].mxu0
  %483 = vmatprep.mubr.bf16.mxu0 0
  %484 = vmatmul.mubr.bf16.gmra.mrb[0].mxu0 %v297
  %v485 = vpop.f32.mrb[0].mxu0
  %v486 = vadd.f32 0.0, %v485
  %v487 = vpop.f32.mrb[0].mxu0
  %v488 = vpop.f32.mrb[0].mxu0
  %v489 = vadd.f32 0.0, %v488
  %v490 = vpop.f32.mrb[0].mxu0
  %491 = vmatprep.mubr.bf16.mxu0 0
  %492 = vmatmul.mubr.bf16.gmra.mrb[0].mxu0 %v300
  %v493 = vpop.f32.mrb[0].mxu0
  %v494 = vadd.f32 0.0, %v493
  %v495 = vpop.f32.mrb[0].mxu0
  %v496 = vpop.f32.mrb[0].mxu0
  %v497 = vadd.f32 0.0, %v496
  %v498 = vpop.f32.mrb[0].mxu0
  %499 = vmatprep.mubr.bf16.mxu0 0
  %500 = vmatmul.mubr.bf16.gmra.mrb[0].mxu0 %v303
  %v501 = vpop.f32.mrb[0].mxu0
  %v502 = vadd.f32 0.0, %v501
  %v503 = vpop.f32.mrb[0].mxu0
  %v504 = vpop.f32.mrb[0].mxu0
  %v505 = vadd.f32 0.0, %v504
  %v506 = vpop.f32.mrb[0].mxu0
  %507 = vmatprep.mubr.bf16.mxu0 0
  %508 = vmatmul.mubr.bf16.gmra.mrb[0].mxu0 %v306
  %v509 = vpop.f32.mrb[0].mxu0
  %v510 = vadd.f32 0.0, %v509
  %v511 = vpop.f32.mrb[0].mxu0
  %v512 = vpop.f32.mrb[0].mxu0
  %v513 = vadd.f32 0.0, %v512
  %v514 = vpop.f32.mrb[0].mxu0
  %515 = vmatprep.mubr.bf16.mxu0 0
  %516 = vmatmul.mubr.bf16.gmra.mrb[0].mxu0 %v309
  %v517 = vpop.f32.mrb[0].mxu0
  %v518 = vadd.f32 0.0, %v517
  %v519 = vpop.f32.mrb[0].mxu0
  %v520 = vpop.f32.mrb[0].mxu0
  %v521 = vadd.f32 0.0, %v520
  %v522 = vpop.f32.mrb[0].mxu0
  %523 = vmatprep.mubr.bf16.mxu0 0
  %524 = vmatmul.mubr.bf16.gmra.mrb[0].mxu0 %v312
  %v525 = vpop.f32.mrb[0].mxu0
  %v526 = vadd.f32 0.0, %v525
  %v527 = vpop.f32.mrb[0].mxu0
  %v528 = vpop.f32.mrb[0].mxu0
  %v529 = vadd.f32 0.0, %v528
  %v530 = vpop.f32.mrb[0].mxu0
  %531 = vmatprep.mubr.bf16.mxu0 0
  %532 = vmatmul.mubr.bf16.gmra.mrb[0].mxu0 %v315
  %v533 = vpop.f32.mrb[0].mxu0
  %v534 = vadd.f32 0.0, %v533
  %v535 = vpop.f32.mrb[0].mxu0
  %v536 = vpop.f32.mrb[0].mxu0
  %v537 = vadd.f32 0.0, %v536
  %v538 = vpop.f32.mrb[0].mxu0
  %539 = vmatprep.mubr.bf16.mxu0 0
  %540 = vmatmul.mubr.bf16.gmra.mrb[0].mxu0 %v318
  %v541 = vpop.f32.mrb[0].mxu0
  %v542 = vadd.f32 0.0, %v541
  %v543 = vpop.f32.mrb[0].mxu0
  %v544 = vpop.f32.mrb[0].mxu0
  %v545 = vadd.f32 0.0, %v544
  %v546 = vpop.f32.mrb[0].mxu0
  %547 = vmatprep.mubr.bf16.mxu0 0
  %548 = vmatmul.mubr.bf16.gmra.mrb[0].mxu0 %v321
  %v549 = vpop.f32.mrb[0].mxu0
  %v550 = vadd.f32 0.0, %v549
  %v551 = vpop.f32.mrb[0].mxu0
  %v552 = vpop.f32.mrb[0].mxu0
  %v553 = vadd.f32 0.0, %v552
  %v554 = vpop.f32.mrb[0].mxu0
  %555 = vmatprep.mubr.bf16.mxu0 0
  %556 = vmatmul.mubr.bf16.gmra.mrb[0].mxu0 %v324
  %v557 = vpop.f32.mrb[0].mxu0
  %v558 = vadd.f32 0.0, %v557
  %v559 = vpop.f32.mrb[0].mxu0
  %v560 = vpop.f32.mrb[0].mxu0
  %v561 = vadd.f32 0.0, %v560
  %v562 = vpop.f32.mrb[0].mxu0
  %563 = vmatprep.mubr.bf16.mxu0 0
  %564 = vmatmul.mubr.bf16.gmra.mrb[0].mxu0 %v327
  %v565 = vpop.f32.mrb[0].mxu0
  %v566 = vadd.f32 0.0, %v565
  %v567 = vpop.f32.mrb[0].mxu0
  %v568 = vpop.f32.mrb[0].mxu0
  %v569 = vadd.f32 0.0, %v568
  %v570 = vpop.f32.mrb[0].mxu0
  %571 = vmatprep.mubr.bf16.mxu0 0
  %572 = vmatmul.mubr.bf16.gmra.mrb[0].mxu0 %v330
  %v573 = vpop.f32.mrb[0].mxu0
  %v574 = vadd.f32 0.0, %v573
  %v575 = vpop.f32.mrb[0].mxu0
  %v576 = vpop.f32.mrb[0].mxu0
  %v577 = vadd.f32 0.0, %v576
  %v578 = vpop.f32.mrb[0].mxu0
  %579 = vmatprep.mubr.bf16.mxu0 0
  %580 = vmatmul.mubr.bf16.gmra.mrb[0].mxu0 %v333
  %v581 = vpop.f32.mrb[0].mxu0
  %v582 = vadd.f32 0.0, %v581
  %v583 = vpop.f32.mrb[0].mxu0
  %v584 = vpop.f32.mrb[0].mxu0
  %v585 = vadd.f32 0.0, %v584
  %v586 = vpop.f32.mrb[0].mxu0
  %587 = vmatprep.mubr.bf16.mxu0 0
  %588 = vmatmul.mubr.bf16.gmra.mrb[0].mxu0 %v336
  %v589 = vpop.f32.mrb[0].mxu0
  %v590 = vadd.f32 0.0, %v589
  %v591 = vpop.f32.mrb[0].mxu0
  %v592 = vpop.f32.mrb[0].mxu0
  %v593 = vadd.f32 0.0, %v592
  %v594 = vpop.f32.mrb[0].mxu0
  %595 = vmatprep.mubr.bf16.mxu0 0
  %596 = vmatmul.mubr.bf16.gmra.mrb[0].mxu0 %v339
  %v597 = vpop.f32.mrb[0].mxu0
  %v598 = vadd.f32 0.0, %v597
  %v599 = vpop.f32.mrb[0].mxu0
  %v600 = vpop.f32.mrb[0].mxu0
  %v601 = vadd.f32 0.0, %v600
  %v602 = vpop.f32.mrb[0].mxu0
  %603 = vmatprep.mubr.bf16.mxu0 0
  %604 = vmatmul.mubr.bf16.gmra.mrb[0].mxu0 %v342
  %v605 = vpop.f32.mrb[0].mxu0
  %v606 = vadd.f32 0.0, %v605
  %v607 = vpop.f32.mrb[0].mxu0
  %v608 = vpop.f32.mrb[0].mxu0
  %v609 = vadd.f32 0.0, %v608
  %v610 = vpop.f32.mrb[0].mxu0
  %611 = vmatprep.mubr.bf16.mxu0 0
  %612 = vmatmul.mubr.bf16.gmra.mrb[0].mxu0 %v345
  %v613 = vpop.f32.mrb[0].mxu0
  %v614 = vadd.f32 0.0, %v613
  %v615 = vpop.f32.mrb[0].mxu0
  %v616 = vpop.f32.mrb[0].mxu0
  %v617 = vadd.f32 0.0, %v616
  %v618 = vpop.f32.mrb[0].mxu0
  %619 = vmatprep.mubr.bf16.mxu0 0
  %620 = vmatmul.mubr.bf16.gmra.mrb[0].mxu0 %v348
  %v621 = vpop.f32.mrb[0].mxu0
  %v622 = vadd.f32 0.0, %v621
  %v623 = vpop.f32.mrb[0].mxu0
  %v624 = vpop.f32.mrb[0].mxu0
  %v625 = vadd.f32 0.0, %v624
  %v626 = vpop.f32.mrb[0].mxu0
  %627 = vmatprep.mubr.bf16.mxu0 0
  %628 = vmatmul.mubr.bf16.gmra.mrb[0].mxu0 %v351
  %v629 = vpop.f32.mrb[0].mxu0
  %v630 = vadd.f32 0.0, %v629
  %v631 = vpop.f32.mrb[0].mxu0
  %v632 = vpop.f32.mrb[0].mxu0
  %v633 = vadd.f32 0.0, %v632
  %v634 = vpop.f32.mrb[0].mxu0
  %635 = vmatprep.mubr.bf16.mxu0 0
  %636 = vmatmul.mubr.bf16.gmra.mrb[0].mxu0 %v354
  %v637 = vpop.f32.mrb[0].mxu0
  %v638 = vadd.f32 0.0, %v637
  %v639 = vpop.f32.mrb[0].mxu0
  %v640 = vpop.f32.mrb[0].mxu0
  %v641 = vadd.f32 0.0, %v640
  %v642 = vpop.f32.mrb[0].mxu0
  %643 = vmatprep.mubr.bf16.mxu0 0
  %644 = vmatmul.mubr.bf16.gmra.mrb[0].mxu0 %v357
  %v645 = vpop.f32.mrb[0].mxu0
  %v646 = vadd.f32 0.0, %v645
  %v647 = vpop.f32.mrb[0].mxu0
  %v648 = vpop.f32.mrb[0].mxu0
  %v649 = vadd.f32 0.0, %v648
  %v650 = vpop.f32.mrb[0].mxu0
  %651 = vdwg.mxu0
  %v652 = vld [vmem:[%s2] sm:$0x1]
  %v654 = vlaneseq
  %v655 = vshrl.u32 %v654, 7
  %v656 = vsub.s32 0, %v655
  %v657 = vrot.slane %v652, %v656
  %v659 = vmul.f32 %v398, %v657
  %v660 = vmul.f32 %v401, %v657
  %v661 = vmul.f32 %v406, %v657
  %v662 = vmul.f32 %v409, %v657
  %v663 = vmul.f32 %v414, %v657
  %v664 = vmul.f32 %v417, %v657
  %v665 = vmul.f32 %v422, %v657
  %v666 = vmul.f32 %v425, %v657
  %v667 = vmul.f32 %v430, %v657
  %v668 = vmul.f32 %v433, %v657
  %v669 = vmul.f32 %v438, %v657
  %v670 = vmul.f32 %v441, %v657
  %v671 = vmul.f32 %v446, %v657
  %v672 = vmul.f32 %v449, %v657
  %v673 = vmul.f32 %v454, %v657
  %v674 = vmul.f32 %v457, %v657
  %v675 = vmul.f32 %v462, %v657
  %v676 = vmul.f32 %v465, %v657
  %v677 = vmul.f32 %v470, %v657
  %v678 = vmul.f32 %v473, %v657
  %v679 = vmul.f32 %v478, %v657
  %v680 = vmul.f32 %v481, %v657
  %v681 = vmul.f32 %v486, %v657
  %v682 = vmul.f32 %v489, %v657
  %v683 = vmul.f32 %v494, %v657
  %v684 = vmul.f32 %v497, %v657
  %v685 = vmul.f32 %v502, %v657
  %v686 = vmul.f32 %v505, %v657
  %v687 = vmul.f32 %v510, %v657
  %v688 = vmul.f32 %v513, %v657
  %v689 = vmul.f32 %v518, %v657
  %v690 = vmul.f32 %v521, %v657
  %v691 = vmul.f32 %v526, %v657
  %v692 = vmul.f32 %v529, %v657
  %v693 = vmul.f32 %v534, %v657
  %v694 = vmul.f32 %v537, %v657
  %v695 = vmul.f32 %v542, %v657
  %v696 = vmul.f32 %v545, %v657
  %v697 = vmul.f32 %v550, %v657
  %v698 = vmul.f32 %v553, %v657
  %v699 = vmul.f32 %v558, %v657
  %v700 = vmul.f32 %v561, %v657
  %v701 = vmul.f32 %v566, %v657
  %v702 = vmul.f32 %v569, %v657
  %v703 = vmul.f32 %v574, %v657
  %v704 = vmul.f32 %v577, %v657
  %v705 = vmul.f32 %v582, %v657
  %v706 = vmul.f32 %v585, %v657
  %v707 = vmul.f32 %v590, %v657
  %v708 = vmul.f32 %v593, %v657
  %v709 = vmul.f32 %v598, %v657
  %v710 = vmul.f32 %v601, %v657
  %v711 = vmul.f32 %v606, %v657
  %v712 = vmul.f32 %v609, %v657
  %v713 = vmul.f32 %v614, %v657
  %v714 = vmul.f32 %v617, %v657
  %v715 = vmul.f32 %v622, %v657
  %v716 = vmul.f32 %v625, %v657
  %v717 = vmul.f32 %v630, %v657
  %v718 = vmul.f32 %v633, %v657
  %v719 = vmul.f32 %v638, %v657
  %v720 = vmul.f32 %v641, %v657
  %v721 = vmul.f32 %v646, %v657
  %v722 = vmul.f32 %v649, %v657
  %v723 = vld [vmem:[%s3] sm:$0x1]
  %v725 = vlaneseq
  %v726 = vshrl.u32 %v725, 7
  %v727 = vsub.s32 0, %v726
  %v728 = vrot.slane %v723, %v727
  %v730 = vadd.f32 %v659, %v728
  %v731 = vadd.f32 %v660, %v728
  %v732 = vadd.f32 %v661, %v728
  %v733 = vadd.f32 %v662, %v728
  %v734 = vadd.f32 %v663, %v728
  %v735 = vadd.f32 %v664, %v728
  %v736 = vadd.f32 %v665, %v728
  %v737 = vadd.f32 %v666, %v728
  %v738 = vadd.f32 %v667, %v728
  %v739 = vadd.f32 %v668, %v728
  %v740 = vadd.f32 %v669, %v728
  %v741 = vadd.f32 %v670, %v728
  %v742 = vadd.f32 %v671, %v728
  %v743 = vadd.f32 %v672, %v728
  %v744 = vadd.f32 %v673, %v728
  %v745 = vadd.f32 %v674, %v728
  %v746 = vadd.f32 %v675, %v728
  %v747 = vadd.f32 %v676, %v728
  %v748 = vadd.f32 %v677, %v728
  %v749 = vadd.f32 %v678, %v728
  %v750 = vadd.f32 %v679, %v728
  %v751 = vadd.f32 %v680, %v728
  %v752 = vadd.f32 %v681, %v728
  %v753 = vadd.f32 %v682, %v728
  %v754 = vadd.f32 %v683, %v728
  %v755 = vadd.f32 %v684, %v728
  %v756 = vadd.f32 %v685, %v728
  %v757 = vadd.f32 %v686, %v728
  %v758 = vadd.f32 %v687, %v728
  %v759 = vadd.f32 %v688, %v728
  %v760 = vadd.f32 %v689, %v728
  %v761 = vadd.f32 %v690, %v728
  %v762 = vadd.f32 %v691, %v728
  %v763 = vadd.f32 %v692, %v728
  %v764 = vadd.f32 %v693, %v728
  %v765 = vadd.f32 %v694, %v728
  %v766 = vadd.f32 %v695, %v728
  %v767 = vadd.f32 %v696, %v728
  %v768 = vadd.f32 %v697, %v728
  %v769 = vadd.f32 %v698, %v728
  %v770 = vadd.f32 %v699, %v728
  %v771 = vadd.f32 %v700, %v728
  %v772 = vadd.f32 %v701, %v728
  %v773 = vadd.f32 %v702, %v728
  %v774 = vadd.f32 %v703, %v728
  %v775 = vadd.f32 %v704, %v728
  %v776 = vadd.f32 %v705, %v728
  %v777 = vadd.f32 %v706, %v728
  %v778 = vadd.f32 %v707, %v728
  %v779 = vadd.f32 %v708, %v728
  %v780 = vadd.f32 %v709, %v728
  %v781 = vadd.f32 %v710, %v728
  %v782 = vadd.f32 %v711, %v728
  %v783 = vadd.f32 %v712, %v728
  %v784 = vadd.f32 %v713, %v728
  %v785 = vadd.f32 %v714, %v728
  %v786 = vadd.f32 %v715, %v728
  %v787 = vadd.f32 %v716, %v728
  %v788 = vadd.f32 %v717, %v728
  %v789 = vadd.f32 %v718, %v728
  %v790 = vadd.f32 %v719, %v728
  %v791 = vadd.f32 %v720, %v728
  %v792 = vadd.f32 %v721, %v728
  %v793 = vadd.f32 %v722, %v728
  %v794 = vmax.f32 %v730, 0.0
  %v795 = vmax.f32 %v731, 0.0
  %v796 = vmax.f32 %v732, 0.0
  %v797 = vmax.f32 %v733, 0.0
  %v798 = vmax.f32 %v734, 0.0
  %v799 = vmax.f32 %v735, 0.0
  %v800 = vmax.f32 %v736, 0.0
  %v801 = vmax.f32 %v737, 0.0
  %v802 = vmax.f32 %v738, 0.0
  %v803 = vmax.f32 %v739, 0.0
  %v804 = vmax.f32 %v740, 0.0
  %v805 = vmax.f32 %v741, 0.0
  %v806 = vmax.f32 %v742, 0.0
  %v807 = vmax.f32 %v743, 0.0
  %v808 = vmax.f32 %v744, 0.0
  %v809 = vmax.f32 %v745, 0.0
  %v810 = vmax.f32 %v746, 0.0
  %v811 = vmax.f32 %v747, 0.0
  %v812 = vmax.f32 %v748, 0.0
  %v813 = vmax.f32 %v749, 0.0
  %v814 = vmax.f32 %v750, 0.0
  %v815 = vmax.f32 %v751, 0.0
  %v816 = vmax.f32 %v752, 0.0
  %v817 = vmax.f32 %v753, 0.0
  %v818 = vmax.f32 %v754, 0.0
  %v819 = vmax.f32 %v755, 0.0
  %v820 = vmax.f32 %v756, 0.0
  %v821 = vmax.f32 %v757, 0.0
  %v822 = vmax.f32 %v758, 0.0
  %v823 = vmax.f32 %v759, 0.0
  %v824 = vmax.f32 %v760, 0.0
  %v825 = vmax.f32 %v761, 0.0
  %v826 = vmax.f32 %v762, 0.0
  %v827 = vmax.f32 %v763, 0.0
  %v828 = vmax.f32 %v764, 0.0
  %v829 = vmax.f32 %v765, 0.0
  %v830 = vmax.f32 %v766, 0.0
  %v831 = vmax.f32 %v767, 0.0
  %v832 = vmax.f32 %v768, 0.0
  %v833 = vmax.f32 %v769, 0.0
  %v834 = vmax.f32 %v770, 0.0
  %v835 = vmax.f32 %v771, 0.0
  %v836 = vmax.f32 %v772, 0.0
  %v837 = vmax.f32 %v773, 0.0
  %v838 = vmax.f32 %v774, 0.0
  %v839 = vmax.f32 %v775, 0.0
  %v840 = vmax.f32 %v776, 0.0
  %v841 = vmax.f32 %v777, 0.0
  %v842 = vmax.f32 %v778, 0.0
  %v843 = vmax.f32 %v779, 0.0
  %v844 = vmax.f32 %v780, 0.0
  %v845 = vmax.f32 %v781, 0.0
  %v846 = vmax.f32 %v782, 0.0
  %v847 = vmax.f32 %v783, 0.0
  %v848 = vmax.f32 %v784, 0.0
  %v849 = vmax.f32 %v785, 0.0
  %v850 = vmax.f32 %v786, 0.0
  %v851 = vmax.f32 %v787, 0.0
  %v852 = vmax.f32 %v788, 0.0
  %v853 = vmax.f32 %v789, 0.0
  %v854 = vmax.f32 %v790, 0.0
  %v855 = vmax.f32 %v791, 0.0
  %v856 = vmax.f32 %v792, 0.0
  %v857 = vmax.f32 %v793, 0.0
  %v858 = vpack.c.bf16 %v795, %v794
  %v859 = vpack.c.bf16 %v797, %v796
  %v860 = vpack.c.bf16 %v799, %v798
  %v861 = vpack.c.bf16 %v801, %v800
  %v862 = vpack.c.bf16 %v803, %v802
  %v863 = vpack.c.bf16 %v805, %v804
  %v864 = vpack.c.bf16 %v807, %v806
  %v865 = vpack.c.bf16 %v809, %v808
  %v866 = vpack.c.bf16 %v811, %v810
  %v867 = vpack.c.bf16 %v813, %v812
  %v868 = vpack.c.bf16 %v815, %v814
  %v869 = vpack.c.bf16 %v817, %v816
  %v870 = vpack.c.bf16 %v819, %v818
  %v871 = vpack.c.bf16 %v821, %v820
  %v872 = vpack.c.bf16 %v823, %v822
  %v873 = vpack.c.bf16 %v825, %v824
  %v874 = vpack.c.bf16 %v827, %v826
  %v875 = vpack.c.bf16 %v829, %v828
  %v876 = vpack.c.bf16 %v831, %v830
  %v877 = vpack.c.bf16 %v833, %v832
  %v878 = vpack.c.bf16 %v835, %v834
  %v879 = vpack.c.bf16 %v837, %v836
  %v880 = vpack.c.bf16 %v839, %v838
  %v881 = vpack.c.bf16 %v841, %v840
  %v882 = vpack.c.bf16 %v843, %v842
  %v883 = vpack.c.bf16 %v845, %v844
  %v884 = vpack.c.bf16 %v847, %v846
  %v885 = vpack.c.bf16 %v849, %v848
  %v886 = vpack.c.bf16 %v851, %v850
  %v887 = vpack.c.bf16 %v853, %v852
  %v888 = vpack.c.bf16 %v855, %v854
  %v889 = vpack.c.bf16 %v857, %v856
  %v922 = vunpack.c.l.b16 %v858
  %v923 = vunpack.c.h.b16 %v858
  %v924 = vunpack.c.l.b16 %v859
  %v925 = vunpack.c.h.b16 %v859
  %v926 = vunpack.c.l.b16 %v860
  %v927 = vunpack.c.h.b16 %v860
  %v928 = vunpack.c.l.b16 %v861
  %v929 = vunpack.c.h.b16 %v861
  %v930 = vunpack.c.l.b16 %v862
  %v931 = vunpack.c.h.b16 %v862
  %v932 = vunpack.c.l.b16 %v863
  %v933 = vunpack.c.h.b16 %v863
  %v934 = vunpack.c.l.b16 %v864
  %v935 = vunpack.c.h.b16 %v864
  %v936 = vunpack.c.l.b16 %v865
  %v937 = vunpack.c.h.b16 %v865
  %v938 = vunpack.c.l.b16 %v866
  %v939 = vunpack.c.h.b16 %v866
  %v940 = vunpack.c.l.b16 %v867
  %v941 = vunpack.c.h.b16 %v867
  %v942 = vunpack.c.l.b16 %v868
  %v943 = vunpack.c.h.b16 %v868
  %v944 = vunpack.c.l.b16 %v869
  %v945 = vunpack.c.h.b16 %v869
  %v946 = vunpack.c.l.b16 %v870
  %v947 = vunpack.c.h.b16 %v870
  %v948 = vunpack.c.l.b16 %v871
  %v949 = vunpack.c.h.b16 %v871
  %v950 = vunpack.c.l.b16 %v872
  %v951 = vunpack.c.h.b16 %v872
  %v952 = vunpack.c.l.b16 %v873
  %v953 = vunpack.c.h.b16 %v873
  %v954 = vunpack.c.l.b16 %v874
  %v955 = vunpack.c.h.b16 %v874
  %v956 = vunpack.c.l.b16 %v875
  %v957 = vunpack.c.h.b16 %v875
  %v958 = vunpack.c.l.b16 %v876
  %v959 = vunpack.c.h.b16 %v876
  %v960 = vunpack.c.l.b16 %v877
  %v961 = vunpack.c.h.b16 %v877
  %v962 = vunpack.c.l.b16 %v878
  %v963 = vunpack.c.h.b16 %v878
  %v964 = vunpack.c.l.b16 %v879
  %v965 = vunpack.c.h.b16 %v879
  %v966 = vunpack.c.l.b16 %v880
  %v967 = vunpack.c.h.b16 %v880
  %v968 = vunpack.c.l.b16 %v881
  %v969 = vunpack.c.h.b16 %v881
  %v970 = vunpack.c.l.b16 %v882
  %v971 = vunpack.c.h.b16 %v882
  %v972 = vunpack.c.l.b16 %v883
  %v973 = vunpack.c.h.b16 %v883
  %v974 = vunpack.c.l.b16 %v884
  %v975 = vunpack.c.h.b16 %v884
  %v976 = vunpack.c.l.b16 %v885
  %v977 = vunpack.c.h.b16 %v885
  %v978 = vunpack.c.l.b16 %v886
  %v979 = vunpack.c.h.b16 %v886
  %v980 = vunpack.c.l.b16 %v887
  %v981 = vunpack.c.h.b16 %v887
  %v982 = vunpack.c.l.b16 %v888
  %v983 = vunpack.c.h.b16 %v888
  %v984 = vunpack.c.l.b16 %v889
  %v985 = vunpack.c.h.b16 %v889
  %v986 = vpack.c.b16 %v922, %v922
  %v987 = vpack.c.b16 %v923, %v923
  %v988 = vpack.c.b16 %v924, %v924
  %v989 = vpack.c.b16 %v925, %v925
  %v990 = vpack.c.b16 %v926, %v926
  %v991 = vpack.c.b16 %v927, %v927
  %v992 = vpack.c.b16 %v928, %v928
  %v993 = vpack.c.b16 %v929, %v929
  %v994 = vpack.c.b16 %v930, %v930
  %v995 = vpack.c.b16 %v931, %v931
  %v996 = vpack.c.b16 %v932, %v932
  %v997 = vpack.c.b16 %v933, %v933
  %v998 = vpack.c.b16 %v934, %v934
  %v999 = vpack.c.b16 %v935, %v935
  %v1000 = vpack.c.b16 %v936, %v936
  %v1001 = vpack.c.b16 %v937, %v937
  %v1002 = vpack.c.b16 %v938, %v938
  %v1003 = vpack.c.b16 %v939, %v939
  %v1004 = vpack.c.b16 %v940, %v940
  %v1005 = vpack.c.b16 %v941, %v941
  %v1006 = vpack.c.b16 %v942, %v942
  %v1007 = vpack.c.b16 %v943, %v943
  %v1008 = vpack.c.b16 %v944, %v944
  %v1009 = vpack.c.b16 %v945, %v945
  %v1010 = vpack.c.b16 %v946, %v946
  %v1011 = vpack.c.b16 %v947, %v947
  %v1012 = vpack.c.b16 %v948, %v948
  %v1013 = vpack.c.b16 %v949, %v949
  %v1014 = vpack.c.b16 %v950, %v950
  %v1015 = vpack.c.b16 %v951, %v951
  %v1016 = vpack.c.b16 %v952, %v952
  %v1017 = vpack.c.b16 %v953, %v953
  %v1018 = vpack.c.b16 %v954, %v954
  %v1019 = vpack.c.b16 %v955, %v955
  %v1020 = vpack.c.b16 %v956, %v956
  %v1021 = vpack.c.b16 %v957, %v957
  %v1022 = vpack.c.b16 %v958, %v958
  %v1023 = vpack.c.b16 %v959, %v959
  %v1024 = vpack.c.b16 %v960, %v960
  %v1025 = vpack.c.b16 %v961, %v961
  %v1026 = vpack.c.b16 %v962, %v962
  %v1027 = vpack.c.b16 %v963, %v963
  %v1028 = vpack.c.b16 %v964, %v964
  %v1029 = vpack.c.b16 %v965, %v965
  %v1030 = vpack.c.b16 %v966, %v966
  %v1031 = vpack.c.b16 %v967, %v967
  %v1032 = vpack.c.b16 %v968, %v968
  %v1033 = vpack.c.b16 %v969, %v969
  %v1034 = vpack.c.b16 %v970, %v970
  %v1035 = vpack.c.b16 %v971, %v971
  %v1036 = vpack.c.b16 %v972, %v972
  %v1037 = vpack.c.b16 %v973, %v973
  %v1038 = vpack.c.b16 %v974, %v974
  %v1039 = vpack.c.b16 %v975, %v975
  %v1040 = vpack.c.b16 %v976, %v976
  %v1041 = vpack.c.b16 %v977, %v977
  %v1042 = vpack.c.b16 %v978, %v978
  %v1043 = vpack.c.b16 %v979, %v979
  %v1044 = vpack.c.b16 %v980, %v980
  %v1045 = vpack.c.b16 %v981, %v981
  %v1046 = vpack.c.b16 %v982, %v982
  %v1047 = vpack.c.b16 %v983, %v983
  %v1048 = vpack.c.b16 %v984, %v984
  %v1049 = vpack.c.b16 %v985, %v985
  %1114 = vst [vmem:[%s4] sm:$0xf] %v986
  %1115 = vst [vmem:[%s4 + $0x4] sm:$0xf] %v987
  %1116 = vst [vmem:[%s4 + $0x8] sm:$0xf] %v988
  %1117 = vst [vmem:[%s4 + $0xc] sm:$0xf] %v989
  %1118 = vst [vmem:[%s4 + $0x10] sm:$0xf] %v990
  %1119 = vst [vmem:[%s4 + $0x14] sm:$0xf] %v991
  %1120 = vst [vmem:[%s4 + $0x18] sm:$0xf] %v992
  %1121 = vst [vmem:[%s4 + $0x1c] sm:$0xf] %v993
  %1122 = vst [vmem:[%s4 + $0x20] sm:$0xf] %v994
  %1123 = vst [vmem:[%s4 + $0x24] sm:$0xf] %v995
  %1124 = vst [vmem:[%s4 + $0x28] sm:$0xf] %v996
  %1125 = vst [vmem:[%s4 + $0x2c] sm:$0xf] %v997
  %1126 = vst [vmem:[%s4 + $0x30] sm:$0xf] %v998
  %1127 = vst [vmem:[%s4 + $0x34] sm:$0xf] %v999
  %1128 = vst [vmem:[%s4 + $0x38] sm:$0xf] %v1000
  %1129 = vst [vmem:[%s4 + $0x3c] sm:$0xf] %v1001
  %1130 = vst [vmem:[%s4 + $0x40] sm:$0xf] %v1002
  %1131 = vst [vmem:[%s4 + $0x44] sm:$0xf] %v1003
  %1132 = vst [vmem:[%s4 + $0x48] sm:$0xf] %v1004
  %1133 = vst [vmem:[%s4 + $0x4c] sm:$0xf] %v1005
  %1134 = vst [vmem:[%s4 + $0x50] sm:$0xf] %v1006
  %1135 = vst [vmem:[%s4 + $0x54] sm:$0xf] %v1007
  %1136 = vst [vmem:[%s4 + $0x58] sm:$0xf] %v1008
  %1137 = vst [vmem:[%s4 + $0x5c] sm:$0xf] %v1009
  %1138 = vst [vmem:[%s4 + $0x60] sm:$0xf] %v1010
  %1139 = vst [vmem:[%s4 + $0x64] sm:$0xf] %v1011
  %1140 = vst [vmem:[%s4 + $0x68] sm:$0xf] %v1012
  %1141 = vst [vmem:[%s4 + $0x6c] sm:$0xf] %v1013
  %1142 = vst [vmem:[%s4 + $0x70] sm:$0xf] %v1014
  %1143 = vst [vmem:[%s4 + $0x74] sm:$0xf] %v1015
  %1144 = vst [vmem:[%s4 + $0x78] sm:$0xf] %v1016
  %1145 = vst [vmem:[%s4 + $0x7c] sm:$0xf] %v1017
  %1146 = vst [vmem:[%s4 + $0x80] sm:$0xf] %v1018
  %1147 = vst [vmem:[%s4 + $0x84] sm:$0xf] %v1019
  %1148 = vst [vmem:[%s4 + $0x88] sm:$0xf] %v1020
  %1149 = vst [vmem:[%s4 + $0x8c] sm:$0xf] %v1021
  %1150 = vst [vmem:[%s4 + $0x90] sm:$0xf] %v1022
  %1151 = vst [vmem:[%s4 + $0x94] sm:$0xf] %v1023
  %1152 = vst [vmem:[%s4 + $0x98] sm:$0xf] %v1024
  %1153 = vst [vmem:[%s4 + $0x9c] sm:$0xf] %v1025
  %1154 = vst [vmem:[%s4 + $0xa0] sm:$0xf] %v1026
  %1155 = vst [vmem:[%s4 + $0xa4] sm:$0xf] %v1027
  %1156 = vst [vmem:[%s4 + $0xa8] sm:$0xf] %v1028
  %1157 = vst [vmem:[%s4 + $0xac] sm:$0xf] %v1029
  %1158 = vst [vmem:[%s4 + $0xb0] sm:$0xf] %v1030
  %1159 = vst [vmem:[%s4 + $0xb4] sm:$0xf] %v1031
  %1160 = vst [vmem:[%s4 + $0xb8] sm:$0xf] %v1032
  %1161 = vst [vmem:[%s4 + $0xbc] sm:$0xf] %v1033
  %1162 = vst [vmem:[%s4 + $0xc0] sm:$0xf] %v1034
  %1163 = vst [vmem:[%s4 + $0xc4] sm:$0xf] %v1035
  %1164 = vst [vmem:[%s4 + $0xc8] sm:$0xf] %v1036
  %1165 = vst [vmem:[%s4 + $0xcc] sm:$0xf] %v1037
  %1166 = vst [vmem:[%s4 + $0xd0] sm:$0xf] %v1038
  %1167 = vst [vmem:[%s4 + $0xd4] sm:$0xf] %v1039
  %1168 = vst [vmem:[%s4 + $0xd8] sm:$0xf] %v1040
  %1169 = vst [vmem:[%s4 + $0xdc] sm:$0xf] %v1041
  %1170 = vst [vmem:[%s4 + $0xe0] sm:$0xf] %v1042
  %1171 = vst [vmem:[%s4 + $0xe4] sm:$0xf] %v1043
  %1172 = vst [vmem:[%s4 + $0xe8] sm:$0xf] %v1044
  %1173 = vst [vmem:[%s4 + $0xec] sm:$0xf] %v1045
  %1174 = vst [vmem:[%s4 + $0xf0] sm:$0xf] %v1046
  %1175 = vst [vmem:[%s4 + $0xf4] sm:$0xf] %v1047
  %1176 = vst [vmem:[%s4 + $0xf8] sm:$0xf] %v1048
  %1177 = vst [vmem:[%s4 + $0xfc] sm:$0xf] %v1049
  // Predicated region
  $region18: #{residual_block_forward.3} parent=0 // pred_check
    _
  $region19: #{residual_block_forward.3} parent=0 // pred_check_branch
    %1179 = sbr.rel (0) target = $region21
  $region20: #{residual_block_forward.3} parent=0 // pred_region
    _
  $region21: #{residual_block_forward.3} parent=0 // pred_fallthru
    _
  // Predicated region
  $region22: #{residual_block_forward.3} parent=0 // pred_check
    _
  $region23: #{residual_block_forward.3} parent=0 // pred_check_branch
    %1181 = sbr.rel (0) target = $region25
  $region24: #{residual_block_forward.3} parent=0 // pred_region
    _
  $region25: #{residual_block_forward.3} parent=0 // pred_fallthru
    _

</llo_original>
